<compile_context>
chip_gen: v7x
topology: tpu7x:2x2x1
jax: 0.10.0
libtpu: 0.0.40
codegen_flags: <defaults>
</compile_context>

<pallas_src>
import numpy as np
import jax
import jax.numpy as jnp
from jax import lax
from jax.experimental import pallas as pl
from jax.experimental.pallas import tpu as pltpu

SAMPLE_RATE = 16000
N_FFT = 512
WIN_LENGTH = 400
HOP = 160
COEF = 0.97
N_FREQ = N_FFT // 2 + 1          # 257 one-sided bins
F_SUB = 264                      # 257 rounded up to a sublane multiple (8)
LANE = 128


def _window_full():
    # torch.hamming_window(win_length) default is periodic=True; torch.stft
    # centers the win_length window inside n_fft with zero padding.
    n = np.arange(WIN_LENGTH)
    win = 0.54 - 0.46 * np.cos(2.0 * np.pi * n / WIN_LENGTH)
    lpad = (N_FFT - WIN_LENGTH) // 2
    wf = np.zeros(N_FFT, dtype=np.float64)
    wf[lpad:lpad + WIN_LENGTH] = win
    return wf


def _make_fused_dft_t():
    """Output-major fused windowed DFT: rows [Re_0..Re_256 | 0s | Im_0..Im_256 | 0s]."""
    wf = _window_full()
    k = np.arange(N_FREQ)
    n = np.arange(N_FFT)
    ang = 2.0 * np.pi * np.outer(k, n) / N_FFT                 # (257, 512)
    wt = np.zeros((2 * F_SUB, N_FFT), dtype=np.float64)
    wt[:N_FREQ] = wf[None, :] * np.cos(ang)
    wt[F_SUB:F_SUB + N_FREQ] = -wf[None, :] * np.sin(ang)      # Im_256 row is 0
    return wt


_WT_NP = _make_fused_dft_t()


def _spectrogram_kernel(frames_ref, wt_ref, o_ref):
    """One grid step = bblk utterances, all freq-major (no transpose anywhere).

    frames_ref: (bblk, n_fft, T)   compute_dtype (bf16 by default)
    wt_ref:     (2*F_SUB, n_fft)   compute_dtype
    o_ref:      (bblk, n_freq, T)  f32
    """
    wt = wt_ref[...]                                  # hoisted, loaded once per step
    for b in range(frames_ref.shape[0]):              # static unrolled loop over bblk
        # Single MXU matmul, M=528 (>= 2*256), K=512: rows [0:257]=Re, [264:521]=Im.
        ri = jnp.dot(wt, frames_ref[b], preferred_element_type=jnp.float32)
        re = ri[:F_SUB, :]                            # sublane slices at multiples of 8
        im = ri[F_SUB:, :]
        power = re * re + im * im                     # f32 VPU (no bf16 elementwise)
        # log(|X| + 1e-9) ~= 0.5*log(|X|^2 + 1e-18): one EUP transcendental, not two.
        logmag = 0.5 * jnp.log(power + 1e-18)
        # InstanceNorm1d(affine=False), biased variance, eps=1e-5; two-pass stats
        # (mean first, then mean(diff^2)) so there is no E[x^2]-E[x]^2 cancellation.
        mean = jnp.mean(logmag, axis=-1, keepdims=True)
        diff = logmag - mean
        var = jnp.mean(diff * diff, axis=-1, keepdims=True)
        y = diff * lax.rsqrt(var + 1e-5)
        o_ref[b] = y[:N_FREQ, :].astype(o_ref.dtype)


def _preprocess(x, dtype):
    """Pre-emphasis + centered STFT framing (JAX glue). Returns (B, n_fft, n_frames)."""
    # PreEmphasis: reflect-pad one sample on the left, conv with [-coef, 1].
    y = x - COEF * jnp.concatenate([x[:, 1:2], x[:, :-1]], axis=1)
    # torch.stft(center=True, pad_mode='reflect').
    pad = N_FFT // 2
    yp = jnp.pad(y, ((0, 0), (pad, pad)), mode="reflect").astype(dtype)
    n_frames = 1 + (yp.shape[1] - N_FFT) // HOP
    # Time-minor frame gather so the whole downstream pipeline is freq-major and the
    # kernel can store the final layout directly.  Cast BEFORE the gather so the
    # 3.2x-expanded frames array is written/read in bf16 (half the HBM traffic).
    idx = jnp.arange(N_FFT)[:, None] + jnp.arange(n_frames)[None, :] * HOP
    frames = yp[:, idx]                               # (B, n_fft, n_frames)
    # TODO(synk): build the frames operand inside the kernel from the padded waveform
    # (hop=160 -> 4 lane-alignment phases of 32 lanes + pltpu.roll) to remove this
    # HBM gather round trip entirely (~2x end-to-end on long utterances).
    return frames, n_frames


def _vmem_capacity_bytes():
    try:
        return int(pltpu.get_tpu_info().vmem_capacity_bytes)
    except Exception:
        return 64 << 20        # conservative (v7x-class) fallback


def _plan(B, n_frames, itemsize):
    """Generation-aware block / VMEM sizing.

    128-MiB VMEM parts (v5e/v6e, 1 TC): big blocks, ~56 MiB budget.
    64-MiB parts (v7x, 2 TCs): <=~28 MiB budget and keep >= 2 grid steps when B >= 2.
    """
    cap = _vmem_capacity_bytes()
    lanes = -(-n_frames // LANE) * LANE
    budget = min(cap * 7 // 16, 56 << 20)
    w_bytes = 2 * F_SUB * N_FFT * itemsize * 2                      # fused DFT (dbl-buffered)
    temps = 5 * F_SUB * lanes * 4                                   # ri/power/logmag/diff f32
    per_b = (N_FFT * lanes * itemsize + F_SUB * lanes * 4) * 2      # in + out blocks, dbl-buf
    bblk = max(1, (budget - w_bytes - temps) // per_b)
    bblk = int(min(bblk, 8, B))
    two_tc = cap <= (96 << 20)          # 64-MiB-class parts (v7x) have 2 TensorCores/chip
    if two_tc and B >= 2:
        bblk = min(bblk, max(1, B // 2))        # >= 2 grid steps so both TCs get work
    # Largest divisor of B that fits: no batch padding, no output slice copy.
    best = 1
    for d in range(1, bblk + 1):
        if B % d == 0:
            best = d
    bblk = best
    need = w_bytes + temps + per_b * bblk + (4 << 20)
    vmem_limit = int(min(max(32 << 20, need), max(cap - (8 << 20), 16 << 20)))
    # TODO(synk): for very long utterances on 64-MiB-VMEM parts, add a time-axis grid
    # split with deferred (sum, sumsq) InstanceNorm statistics to bound per-step VMEM
    # and let B=1 inference use both v7x TensorCores.
    return bblk, vmem_limit


def spectrogram(x, compute_dtype=jnp.bfloat16):
    """x: (B, T) float32 -> (B, 1, n_freq, n_frames) float32.

    compute_dtype is the MXU operand dtype (bf16 is MXU-native and ~2-3x faster
    than emulated f32; pass jnp.float32 for a bit-accurate path)."""
    assert x.ndim == 2, "inputs must be 2-D (batch, time)"
    B = x.shape[0]
    frames, n_frames = _preprocess(x, compute_dtype)       # (B, n_fft, n_frames)
    wt = jnp.asarray(_WT_NP, dtype=compute_dtype)

    itemsize = jnp.dtype(compute_dtype).itemsize
    bblk, vmem_limit = _plan(B, n_frames, itemsize)

    cost = pl.CostEstimate(
        flops=2 * B * (2 * F_SUB) * N_FFT * n_frames,
        transcendentals=B * F_SUB * n_frames,
        bytes_accessed=(frames.size * itemsize + wt.size * itemsize
                        + B * N_FREQ * n_frames * 4))

    out = pl.pallas_call(
        _spectrogram_kernel,
        out_shape=jax.ShapeDtypeStruct((B, N_FREQ, n_frames), jnp.float32),
        grid_spec=pltpu.PrefetchScalarGridSpec(
            num_scalar_prefetch=0,
            grid=(B // bblk,),
            in_specs=[
                # Last two block dims are full array extents -> (8,128) rule satisfied.
                pl.BlockSpec((bblk, N_FFT, n_frames), lambda b: (b, 0, 0)),
                pl.BlockSpec((2 * F_SUB, N_FFT), lambda b: (0, 0)),
            ],
            out_specs=pl.BlockSpec((bblk, N_FREQ, n_frames), lambda b: (b, 0, 0)),
        ),
        compiler_params=pltpu.CompilerParams(
            dimension_semantics=("parallel",),
            vmem_limit_bytes=vmem_limit),
        cost_estimate=cost,
    )(frames, wt)

    # (B, n_freq, n_frames) -> (B, 1, n_freq, n_frames): metadata-only reshape.
    return out[:, None, :, :]


# ----------------------------- references (test only) ------------------------------

def _make_full_dft():
    """Independently built full one-sided (512, 257) matrices — exact-reference path."""
    wf = _window_full()
    nn_, kk = np.meshgrid(np.arange(N_FFT), np.arange(N_FREQ), indexing="ij")
    ang = 2.0 * np.pi * nn_ * kk / N_FFT
    wr = (wf[:, None] * np.cos(ang)).astype(np.float32)
    wi = (-wf[:, None] * np.sin(ang)).astype(np.float32)
    return jnp.asarray(wr), jnp.asarray(wi)


def _reference_exact(x, wr, wi):
    """Pure-JAX f32 reference with the original PyTorch epsilon/variance semantics."""
    frames, _ = _preprocess(x, jnp.float32)
    re = jnp.einsum("nk,bnt->bkt", wr, frames, precision=lax.Precision.HIGHEST)
    im = jnp.einsum("nk,bnt->bkt", wi, frames, precision=lax.Precision.HIGHEST)
    logmag = jnp.log(jnp.sqrt(re * re + im * im) + 1e-9)
    mean = jnp.mean(logmag, axis=-1, keepdims=True)
    var = jnp.mean((logmag - mean) ** 2, axis=-1, keepdims=True)
    return ((logmag - mean) * lax.rsqrt(var + 1e-5))[:, None, :, :]


def _reference_matched(x, dtype):
    """Pure-JAX reference mirroring the kernel's numerics at the given MXU dtype."""
    frames, _ = _preprocess(x, dtype)
    wt = jnp.asarray(_WT_NP, dtype=dtype)
    ri = jnp.einsum("fn,bnt->bft", wt, frames, preferred_element_type=jnp.float32)
    power = ri[:, :F_SUB] ** 2 + ri[:, F_SUB:] ** 2
    logmag = 0.5 * jnp.log(power + 1e-18)
    mean = jnp.mean(logmag, axis=-1, keepdims=True)
    diff = logmag - mean
    var = jnp.mean(diff * diff, axis=-1, keepdims=True)
    y = diff * lax.rsqrt(var + 1e-5)
    return y[:, :N_FREQ][:, None, :, :]


if __name__ == "__main__":
    key = jax.random.PRNGKey(0)
    B, T = 2, 1600                         # 2 utterances, 0.1 s @ 16 kHz
    x = jax.random.normal(key, (B, T), dtype=jnp.float32)
    n_frames = 1 + T // HOP                # 11 frames

    # Fast bf16-MXU path (default): check against a reference with matched numerics.
    out = jax.block_until_ready(jax.jit(spectrogram)(x))
    assert out.shape == (B, 1, N_FREQ, n_frames), out.shape
    assert out.dtype == jnp.float32
    ref_bf16 = jax.block_until_ready(_reference_matched(x, jnp.bfloat16))
    np.testing.assert_allclose(np.asarray(out), np.asarray(ref_bf16),
                               rtol=3e-2, atol=3e-2)

    # Bit-accurate f32 path: check against the exact PyTorch-semantics reference
    # built from independently constructed DFT matrices.
    out32 = jax.block_until_ready(
        jax.jit(lambda v: spectrogram(v, compute_dtype=jnp.float32))(x))
    wr, wi = _make_full_dft()
    ref32 = jax.block_until_ready(_reference_exact(x, wr, wi))
    np.testing.assert_allclose(np.asarray(out32), np.asarray(ref32),
                               rtol=2e-3, atol=2e-3)

    print("KERNEL_OK")
</pallas_src>

<mosaic_0001>
module attributes {stable_mosaic.version = 11 : i64} {
  func.func @_spectrogram_kernel(%arg0: i32, %arg1: memref<1x512x11xbf16, #tpu.memory_space<vmem>>, %arg2: memref<528x512xbf16, #tpu.memory_space<vmem>>, %arg3: memref<1x257x11xf32, #tpu.memory_space<vmem>>) attributes {dimension_semantics = [#tpu.dimension_semantics<parallel>], iteration_bounds = array<i64: 2>, scalar_prefetch = 0 : i64, scratch_operands = 0 : i64, tpu.core_type = #tpu.core_type<tc>, window_params = [{transform_indices = @transform_0, window_bounds = array<i64: 1, 512, 11>}, {pipeline_mode = #tpu.pipeline_mode<synchronous>, transform_indices = @transform_1, window_bounds = array<i64: 528, 512>}, {transform_indices = @transform_2, window_bounds = array<i64: 1, 257, 11>}]} {
    %c0 = arith.constant 0 : index
    %c0_0 = arith.constant 0 : index
    %0 = vector.load %arg2[%c0, %c0_0] : memref<528x512xbf16, #tpu.memory_space<vmem>>, vector<528x512xbf16>
    %c0_1 = arith.constant 0 : index
    %c0_2 = arith.constant 0 : index
    %c0_3 = arith.constant 0 : index
    %1 = vector.load %arg1[%c0_1, %c0_2, %c0_3] : memref<1x512x11xbf16, #tpu.memory_space<vmem>>, vector<1x512x11xbf16>
    %2 = vector.shape_cast %1 : vector<1x512x11xbf16> to vector<512x11xbf16>
    %cst = arith.constant dense<0.000000e+00> : vector<528x11xf32>
    %3 = tpu.matmul %0, %2, %cst {dimension_numbers = #tpu.dot_dimension_numbers<[1], [0], [0], [1], [0, 0, 1, 1], [], []>} : vector<528x512xbf16>, vector<512x11xbf16>, vector<528x11xf32> -> vector<528x11xf32>
    %4 = vector.extract_strided_slice %3 {offsets = [0, 0], sizes = [264, 11], strides = [1, 1]} : vector<528x11xf32> to vector<264x11xf32>
    %5 = vector.extract_strided_slice %3 {offsets = [264, 0], sizes = [264, 11], strides = [1, 1]} : vector<528x11xf32> to vector<264x11xf32>
    %6 = arith.mulf %4, %4 : vector<264x11xf32>
    %7 = arith.mulf %5, %5 : vector<264x11xf32>
    %8 = arith.addf %6, %7 : vector<264x11xf32>
    %cst_4 = arith.constant 1.000000e-18 : f32
    %9 = vector.broadcast %cst_4 : f32 to vector<264x11xf32>
    %10 = arith.addf %8, %9 : vector<264x11xf32>
    %11 = math.log %10 : vector<264x11xf32>
    %cst_5 = arith.constant 5.000000e-01 : f32
    %12 = vector.broadcast %cst_5 : f32 to vector<264x11xf32>
    %13 = arith.mulf %12, %11 : vector<264x11xf32>
    %cst_6 = arith.constant dense<0.000000e+00> : vector<264xf32>
    %14 = vector.multi_reduction <add>, %13, %cst_6 [1] : vector<264x11xf32> to vector<264xf32>
    %15 = vector.shape_cast %14 : vector<264xf32> to vector<264x1xf32>
    %cst_7 = arith.constant 1.100000e+01 : f32
    %16 = vector.broadcast %cst_7 : f32 to vector<264x1xf32>
    %17 = arith.divf %15, %16 : vector<264x1xf32>
    %18 = vector.broadcast %17 : vector<264x1xf32> to vector<264x11xf32>
    %19 = arith.subf %13, %18 : vector<264x11xf32>
    %20 = arith.mulf %19, %19 : vector<264x11xf32>
    %cst_8 = arith.constant dense<0.000000e+00> : vector<264xf32>
    %21 = vector.multi_reduction <add>, %20, %cst_8 [1] : vector<264x11xf32> to vector<264xf32>
    %22 = vector.shape_cast %21 : vector<264xf32> to vector<264x1xf32>
    %cst_9 = arith.constant 1.100000e+01 : f32
    %23 = vector.broadcast %cst_9 : f32 to vector<264x1xf32>
    %24 = arith.divf %22, %23 : vector<264x1xf32>
    %cst_10 = arith.constant 9.99999974E-6 : f32
    %25 = vector.broadcast %cst_10 : f32 to vector<264x1xf32>
    %26 = arith.addf %24, %25 : vector<264x1xf32>
    %27 = math.rsqrt %26 : vector<264x1xf32>
    %28 = vector.broadcast %27 : vector<264x1xf32> to vector<264x11xf32>
    %29 = arith.mulf %19, %28 : vector<264x11xf32>
    %30 = vector.extract_strided_slice %29 {offsets = [0, 0], sizes = [257, 11], strides = [1, 1]} : vector<264x11xf32> to vector<257x11xf32>
    %c0_11 = arith.constant 0 : index
    %c0_12 = arith.constant 0 : index
    %c0_13 = arith.constant 0 : index
    %31 = vector.load %arg3[%c0_11, %c0_12, %c0_13] : memref<1x257x11xf32, #tpu.memory_space<vmem>>, vector<1x257x11xf32>
    %32 = vector.shape_cast %31 : vector<1x257x11xf32> to vector<257x11xf32>
    %33 = vector.shape_cast %30 : vector<257x11xf32> to vector<1x257x11xf32>
    tpu.vector_store %arg3[%c0_11, %c0_12, %c0_13], %33 {strides = array<i32>} : memref<1x257x11xf32, #tpu.memory_space<vmem>>, vector<1x257x11xf32>,
    return
  }
  func.func @transform_0(%arg0: i32) -> (i32, i32, i32) {
    %c0_i32 = arith.constant 0 : i32
    %c0_i32_0 = arith.constant 0 : i32
    %c0_i32_1 = arith.constant 0 : i32
    return %arg0, %c0_i32, %c0_i32_0 : i32, i32, i32
  }
  func.func @transform_1(%arg0: i32) -> (i32, i32) {
    %c0_i32 = arith.constant 0 : i32
    %c0_i32_0 = arith.constant 0 : i32
    %c0_i32_1 = arith.constant 0 : i32
    return %c0_i32, %c0_i32_0 : i32, i32
  }
  func.func @transform_2(%arg0: i32) -> (i32, i32, i32) {
    %c0_i32 = arith.constant 0 : i32
    %c0_i32_0 = arith.constant 0 : i32
    %c0_i32_1 = arith.constant 0 : i32
    return %arg0, %c0_i32, %c0_i32_0 : i32, i32, i32
  }
}

</mosaic_0001>

<llo_original>
// kernel: spectrogram.1
$region0: #{spectrogram.1}
  #allocation0 [shape = 'u32[]', space=smem, size = 0x4, offset = 0x4, fixed_abs, tag = 'smem constant byte address 0x4 - core index']
  #allocation1 [shape = 'u32[144,128]{1,0:T(1,128)}', space=vmem, size = 0x12000, scoped, tag = 'internal scratch']
  %s0 = inlined_call_operand.vmem [shape: bf16[2,512,11], index: 0, kind: input, shape index: {}]
  %s1 = inlined_call_operand.vmem [shape: bf16[528,512], index: 1, kind: input, shape index: {}]
  %s2 = inlined_call_operand.vmem [shape: f32[2,257,11], index: 2, kind: output, shape index: {}]
  %s3 = sld [smem:[#allocation0]]
  $region41: #{spectrogram.1} parent=0
    _
  %s5 = ssub.s32 1, %s3
  %s6 = scalar_select 0, %s5, %s3
  loop: start=0, step=1, limit=4
  $region2: #{spectrogram.1} parent=0 // loop_pre_header
    _
  $region3: #{spectrogram.1} parent=0 // loop_header
    %s8 = sphi 0, %s12
    %p9 = scmp.ge.s32.totalorder %s8, 4
    %s18 = sphi 0, %s20
    %s21 = sphi 0, %s18
    %s22 = sphi 0, %s21
    %s38 = sphi 0, %s22
    %s42 = sphi 0, %s42
    %s44 = sphi 0, %s42
    %s45 = sphi 0, %s44
    %s59 = sphi 0, %s45
    %s65 = sphi 0, %s67
    %s68 = sphi 0, %s65
    %s69 = sphi 0, %s68
    %s85 = sphi 0, %s69
  $region4: #{spectrogram.1} parent=0 // loop_header_branch
    %11 = sbr.rel (%p9) target = $region8
  $region5: #{spectrogram.1} parent=0 // loop_body
    %s13 = ssub.s32 %s8, 1
    %s14 = ssub.s32 %s8, 2
    %s15 = sadd.s32 %s8, 1
    %s16 = ssub.s32 %s8, %s15
    %p17 = scmp.eq.s32.totalorder %s16, 0
    %s19 = sadd.s32 %s18, 1
    %s20 = scalar_select %p17, %s18, %s19
    %p23 = pneg %p17
    %p24 = scmp.eq.s32.totalorder %s8, 1
    %p25 = por %p23, %p24
    %p26 = scmp.ne.s32.totalorder %s18, %s21
    %p27 = scmp.eq.s32.totalorder %s8, 0
    %p28 = por %p26, %p27
    %p29 = scmp.ne.s32.totalorder %s18, %s21
    %p30 = scmp.eq.s32.totalorder %s13, 1
    %p31 = por %p29, %p30
    %p32 = scmp.ne.s32.totalorder %s21, %s22
    %p33 = scmp.eq.s32.totalorder %s13, 0
    %p34 = por %p32, %p33
    %p35 = scmp.ne.s32.totalorder %s21, %s22
    %p36 = scmp.eq.s32.totalorder %s14, 1
    %p37 = por %p35, %p36
    %p39 = scmp.ne.s32.totalorder %s22, %s38
    %p40 = scmp.eq.s32.totalorder %s14, 0
    %p41 = por %p39, %p40
    %s43 = sadd.s32 %s42, 1
    %p46 = scmp.eq.s32.totalorder %s8, 1
    %p47 = scmp.ne.s32.totalorder %s42, %s44
    %p48 = scmp.eq.s32.totalorder %s8, 0
    %p49 = por %p47, %p48
    %p50 = scmp.ne.s32.totalorder %s42, %s44
    %p51 = scmp.eq.s32.totalorder %s13, 1
    %p52 = por %p50, %p51
    %p53 = scmp.ne.s32.totalorder %s44, %s45
    %p54 = scmp.eq.s32.totalorder %s13, 0
    %p55 = por %p53, %p54
    %p56 = scmp.ne.s32.totalorder %s44, %s45
    %p57 = scmp.eq.s32.totalorder %s14, 1
    %p58 = por %p56, %p57
    %p60 = scmp.ne.s32.totalorder %s45, %s59
    %p61 = scmp.eq.s32.totalorder %s14, 0
    %p62 = por %p60, %p61
    %s63 = ssub.s32 %s8, %s15
    %p64 = scmp.eq.s32.totalorder %s63, 0
    %s66 = sadd.s32 %s65, 1
    %s67 = scalar_select %p64, %s65, %s66
    %p70 = pneg %p64
    %p71 = scmp.eq.s32.totalorder %s8, 1
    %p72 = por %p70, %p71
    %p73 = scmp.ne.s32.totalorder %s65, %s68
    %p74 = scmp.eq.s32.totalorder %s8, 0
    %p75 = por %p73, %p74
    %p76 = scmp.ne.s32.totalorder %s65, %s68
    %p77 = scmp.eq.s32.totalorder %s13, 1
    %p78 = por %p76, %p77
    %p79 = scmp.ne.s32.totalorder %s68, %s69
    %p80 = scmp.eq.s32.totalorder %s13, 0
    %p81 = por %p79, %p80
    %p82 = scmp.ne.s32.totalorder %s68, %s69
    %p83 = scmp.eq.s32.totalorder %s14, 1
    %p84 = por %p82, %p83
    %p86 = scmp.ne.s32.totalorder %s69, %s85
    %p87 = scmp.eq.s32.totalorder %s14, 0
    %p88 = por %p86, %p87
    %p89 = scmp.le.s32.totalorder 1, %s8
    %p90 = scmp.lt.s32.totalorder %s8, 3
    %p91 = pnand %p89, %p90
    %p92 = pneg %p91
    // Predicated region
    $region9: #{spectrogram.1} parent=5 // pred_check
      _
    $region10: #{spectrogram.1} parent=5 // pred_check_branch
      %94 = sbr.rel (%p91) target = $region12
    $region11: #{spectrogram.1} parent=5 // pred_region
      %s95 = ssub.s32 %s8, 1
      // Predicated region
      $region13: #{spectrogram.1} parent=11 // pred_check
        %p96 = pneg %p55
      $region14: #{spectrogram.1} parent=11 // pred_check_branch
        %98 = sbr.rel (%p96) target = $region16
      $region15: #{spectrogram.1} parent=11 // pred_region
        _
      $region16: #{spectrogram.1} parent=11 // pred_fallthru
        _
    $region12: #{spectrogram.1} parent=5 // pred_fallthru
      _
    %p99 = scmp.lt.s32.totalorder %s8, 2
    // Predicated region
    $region17: #{spectrogram.1} parent=5 // pred_check
      %p100 = pneg %p99
    $region18: #{spectrogram.1} parent=5 // pred_check_branch
      %102 = sbr.rel (%p100) target = $region20
    $region19: #{spectrogram.1} parent=5 // pred_region
      // Predicated region
      $region21: #{spectrogram.1} parent=19 // pred_check
        %p103 = pneg %p28
      $region22: #{spectrogram.1} parent=19 // pred_check_branch
        %105 = sbr.rel (%p103) target = $region24
      $region23: #{spectrogram.1} parent=19 // pred_region
        %p106 = scmp.lt.s32.totalorder %s8, 1
        %s107 = scalar_select %p106, %s8, 1
        %s108 = smul.addr %s107, 64
        %s109 = smul.addr %s108, 4
        %s110 = scalar_lea.vmem %s0, %s109
      $region24: #{spectrogram.1} parent=19 // pred_fallthru
        _
    $region20: #{spectrogram.1} parent=5 // pred_fallthru
      _
    %p111 = scmp.le.s32.totalorder 1, %s8
    %p112 = scmp.lt.s32.totalorder %s8, 3
    %p113 = pnand %p111, %p112
    %p114 = pneg %p113
    // Predicated region
    $region25: #{spectrogram.1} parent=5 // pred_check
      _
    $region26: #{spectrogram.1} parent=5 // pred_check_branch
      %116 = sbr.rel (%p113) target = $region28
    $region27: #{spectrogram.1} parent=5 // pred_region
      %s117 = ssub.s32 %s8, 1
      %p118 = scmp.lt.s32.totalorder %s13, 1
      %s119 = scalar_select %p118, %s13, 1
      %s120 = smul.addr %s119, 64
      %s121 = smul.addr %s120, 4
      %s122 = scalar_lea.vmem %s0, %s121
      %p123 = pneg %p34
      %p124 = pneg %p31
      %p125 = pneg %p55
      %p126 = pneg %p52
      %p127 = pneg %p81
      %p128 = pneg %p78
      %p129 = scmp.lt.s32.totalorder %s13, 1
      %s130 = scalar_select %p129, %s13, 1
      %s131 = smul.addr %s130, 33
      %s132 = smul.addr %s131, 8
      %s133 = scalar_lea.vmem %s2, %s132
      %p134 = scmp.lt.s32.totalorder %s13, 1
      %s135 = scalar_select %p134, %s13, 1
      %s136 = smul.addr %s135, 64
      %s137 = smul.addr %s136, 4
      %s138 = scalar_lea.vmem %s0, %s137
      %p139 = scmp.lt.s32.totalorder %s13, 1
      %s140 = scalar_select %p139, %s13, 1
      %s141 = smul.addr %s140, 33
      %s142 = smul.addr %s141, 8
      %s143 = scalar_lea.vmem %s2, %s142
      %v145 = vld [vmem:[%s1] sm:$0xff]
      %v146 = vld [vmem:[%s1 + $0x8] sm:$0xff]
      %v147 = vld [vmem:[%s1 + $0x10] sm:$0xff]
      %v148 = vld [vmem:[%s1 + $0x18] sm:$0xff]
      %v149 = vld [vmem:[%s1 + $0x20] sm:$0xff]
      %v150 = vld [vmem:[%s1 + $0x28] sm:$0xff]
      %v151 = vld [vmem:[%s1 + $0x30] sm:$0xff]
      %v152 = vld [vmem:[%s1 + $0x38] sm:$0xff]
      %v153 = vld [vmem:[%s1 + $0x40] sm:$0xff]
      %v154 = vld [vmem:[%s1 + $0x48] sm:$0xff]
      %v155 = vld [vmem:[%s1 + $0x50] sm:$0xff]
      %v156 = vld [vmem:[%s1 + $0x58] sm:$0xff]
      %v157 = vld [vmem:[%s1 + $0x60] sm:$0xff]
      %v158 = vld [vmem:[%s1 + $0x68] sm:$0xff]
      %v159 = vld [vmem:[%s1 + $0x70] sm:$0xff]
      %v160 = vld [vmem:[%s1 + $0x78] sm:$0xff]
      %v161 = vld [vmem:[%s1 + $0x80] sm:$0xff]
      %v162 = vld [vmem:[%s1 + $0x88] sm:$0xff]
      %v163 = vld [vmem:[%s1 + $0x90] sm:$0xff]
      %v164 = vld [vmem:[%s1 + $0x98] sm:$0xff]
      %v165 = vld [vmem:[%s1 + $0xa0] sm:$0xff]
      %v166 = vld [vmem:[%s1 + $0xa8] sm:$0xff]
      %v167 = vld [vmem:[%s1 + $0xb0] sm:$0xff]
      %v168 = vld [vmem:[%s1 + $0xb8] sm:$0xff]
      %v169 = vld [vmem:[%s1 + $0xc0] sm:$0xff]
      %v170 = vld [vmem:[%s1 + $0xc8] sm:$0xff]
      %v171 = vld [vmem:[%s1 + $0xd0] sm:$0xff]
      %v172 = vld [vmem:[%s1 + $0xd8] sm:$0xff]
      %v173 = vld [vmem:[%s1 + $0xe0] sm:$0xff]
      %v174 = vld [vmem:[%s1 + $0xe8] sm:$0xff]
      %v175 = vld [vmem:[%s1 + $0xf0] sm:$0xff]
      %v176 = vld [vmem:[%s1 + $0xf8] sm:$0xff]
      %v177 = vld [vmem:[%s1 + $0x100] sm:$0xff]
      %v178 = vld [vmem:[%s1 + $0x108] sm:$0xff]
      %v179 = vld [vmem:[%s1 + $0x110] sm:$0xff]
      %v180 = vld [vmem:[%s1 + $0x118] sm:$0xff]
      %v181 = vld [vmem:[%s1 + $0x120] sm:$0xff]
      %v182 = vld [vmem:[%s1 + $0x128] sm:$0xff]
      %v183 = vld [vmem:[%s1 + $0x130] sm:$0xff]
      %v184 = vld [vmem:[%s1 + $0x138] sm:$0xff]
      %v185 = vld [vmem:[%s1 + $0x140] sm:$0xff]
      %v186 = vld [vmem:[%s1 + $0x148] sm:$0xff]
      %v187 = vld [vmem:[%s1 + $0x150] sm:$0xff]
      %v188 = vld [vmem:[%s1 + $0x158] sm:$0xff]
      %v189 = vld [vmem:[%s1 + $0x160] sm:$0xff]
      %v190 = vld [vmem:[%s1 + $0x168] sm:$0xff]
      %v191 = vld [vmem:[%s1 + $0x170] sm:$0xff]
      %v192 = vld [vmem:[%s1 + $0x178] sm:$0xff]
      %v193 = vld [vmem:[%s1 + $0x180] sm:$0xff]
      %v194 = vld [vmem:[%s1 + $0x188] sm:$0xff]
      %v195 = vld [vmem:[%s1 + $0x190] sm:$0xff]
      %v196 = vld [vmem:[%s1 + $0x198] sm:$0xff]
      %v197 = vld [vmem:[%s1 + $0x1a0] sm:$0xff]
      %v198 = vld [vmem:[%s1 + $0x1a8] sm:$0xff]
      %v199 = vld [vmem:[%s1 + $0x1b0] sm:$0xff]
      %v200 = vld [vmem:[%s1 + $0x1b8] sm:$0xff]
      %v201 = vld [vmem:[%s1 + $0x1c0] sm:$0xff]
      %v202 = vld [vmem:[%s1 + $0x1c8] sm:$0xff]
      %v203 = vld [vmem:[%s1 + $0x1d0] sm:$0xff]
      %v204 = vld [vmem:[%s1 + $0x1d8] sm:$0xff]
      %v205 = vld [vmem:[%s1 + $0x1e0] sm:$0xff]
      %v206 = vld [vmem:[%s1 + $0x1e8] sm:$0xff]
      %v207 = vld [vmem:[%s1 + $0x1f0] sm:$0xff]
      %v208 = vld [vmem:[%s1 + $0x1f8] sm:$0xff]
      %v209 = vld [vmem:[%s1 + $0x200] sm:$0xff]
      %v210 = vld [vmem:[%s1 + $0x208] sm:$0xff]
      %v211 = vld [vmem:[%s1 + $0x210] sm:$0xff]
      %v212 = vld [vmem:[%s1 + $0x218] sm:$0xff]
      %v213 = vld [vmem:[%s1 + $0x220] sm:$0xff]
      %v214 = vld [vmem:[%s1 + $0x228] sm:$0xff]
      %v215 = vld [vmem:[%s1 + $0x230] sm:$0xff]
      %v216 = vld [vmem:[%s1 + $0x238] sm:$0xff]
      %v217 = vld [vmem:[%s1 + $0x240] sm:$0xff]
      %v218 = vld [vmem:[%s1 + $0x248] sm:$0xff]
      %v219 = vld [vmem:[%s1 + $0x250] sm:$0xff]
      %v220 = vld [vmem:[%s1 + $0x258] sm:$0xff]
      %v221 = vld [vmem:[%s1 + $0x260] sm:$0xff]
      %v222 = vld [vmem:[%s1 + $0x268] sm:$0xff]
      %v223 = vld [vmem:[%s1 + $0x270] sm:$0xff]
      %v224 = vld [vmem:[%s1 + $0x278] sm:$0xff]
      %v225 = vld [vmem:[%s1 + $0x280] sm:$0xff]
      %v226 = vld [vmem:[%s1 + $0x288] sm:$0xff]
      %v227 = vld [vmem:[%s1 + $0x290] sm:$0xff]
      %v228 = vld [vmem:[%s1 + $0x298] sm:$0xff]
      %v229 = vld [vmem:[%s1 + $0x2a0] sm:$0xff]
      %v230 = vld [vmem:[%s1 + $0x2a8] sm:$0xff]
      %v231 = vld [vmem:[%s1 + $0x2b0] sm:$0xff]
      %v232 = vld [vmem:[%s1 + $0x2b8] sm:$0xff]
      %v233 = vld [vmem:[%s1 + $0x2c0] sm:$0xff]
      %v234 = vld [vmem:[%s1 + $0x2c8] sm:$0xff]
      %v235 = vld [vmem:[%s1 + $0x2d0] sm:$0xff]
      %v236 = vld [vmem:[%s1 + $0x2d8] sm:$0xff]
      %v237 = vld [vmem:[%s1 + $0x2e0] sm:$0xff]
      %v238 = vld [vmem:[%s1 + $0x2e8] sm:$0xff]
      %v239 = vld [vmem:[%s1 + $0x2f0] sm:$0xff]
      %v240 = vld [vmem:[%s1 + $0x2f8] sm:$0xff]
      %v241 = vld [vmem:[%s1 + $0x300] sm:$0xff]
      %v242 = vld [vmem:[%s1 + $0x308] sm:$0xff]
      %v243 = vld [vmem:[%s1 + $0x310] sm:$0xff]
      %v244 = vld [vmem:[%s1 + $0x318] sm:$0xff]
      %v245 = vld [vmem:[%s1 + $0x320] sm:$0xff]
      %v246 = vld [vmem:[%s1 + $0x328] sm:$0xff]
      %v247 = vld [vmem:[%s1 + $0x330] sm:$0xff]
      %v248 = vld [vmem:[%s1 + $0x338] sm:$0xff]
      %v249 = vld [vmem:[%s1 + $0x340] sm:$0xff]
      %v250 = vld [vmem:[%s1 + $0x348] sm:$0xff]
      %v251 = vld [vmem:[%s1 + $0x350] sm:$0xff]
      %v252 = vld [vmem:[%s1 + $0x358] sm:$0xff]
      %v253 = vld [vmem:[%s1 + $0x360] sm:$0xff]
      %v254 = vld [vmem:[%s1 + $0x368] sm:$0xff]
      %v255 = vld [vmem:[%s1 + $0x370] sm:$0xff]
      %v256 = vld [vmem:[%s1 + $0x378] sm:$0xff]
      %v257 = vld [vmem:[%s1 + $0x380] sm:$0xff]
      %v258 = vld [vmem:[%s1 + $0x388] sm:$0xff]
      %v259 = vld [vmem:[%s1 + $0x390] sm:$0xff]
      %v260 = vld [vmem:[%s1 + $0x398] sm:$0xff]
      %v261 = vld [vmem:[%s1 + $0x3a0] sm:$0xff]
      %v262 = vld [vmem:[%s1 + $0x3a8] sm:$0xff]
      %v263 = vld [vmem:[%s1 + $0x3b0] sm:$0xff]
      %v264 = vld [vmem:[%s1 + $0x3b8] sm:$0xff]
      %v265 = vld [vmem:[%s1 + $0x3c0] sm:$0xff]
      %v266 = vld [vmem:[%s1 + $0x3c8] sm:$0xff]
      %v267 = vld [vmem:[%s1 + $0x3d0] sm:$0xff]
      %v268 = vld [vmem:[%s1 + $0x3d8] sm:$0xff]
      %v269 = vld [vmem:[%s1 + $0x3e0] sm:$0xff]
      %v270 = vld [vmem:[%s1 + $0x3e8] sm:$0xff]
      %v271 = vld [vmem:[%s1 + $0x3f0] sm:$0xff]
      %v272 = vld [vmem:[%s1 + $0x3f8] sm:$0xff]
      %v273 = vld [vmem:[%s1 + $0x400] sm:$0xff]
      %v274 = vld [vmem:[%s1 + $0x408] sm:$0xff]
      %v275 = vld [vmem:[%s1 + $0x410] sm:$0xff]
      %v276 = vld [vmem:[%s1 + $0x418] sm:$0xff]
      %v277 = vld [vmem:[%s138] sm:$0xf]
      %v278 = vld [vmem:[%s138 + $0x4] sm:$0xf]
      %v279 = vld [vmem:[%s138 + $0x8] sm:$0xf]
      %v280 = vld [vmem:[%s138 + $0xc] sm:$0xf]
      %v281 = vld [vmem:[%s138 + $0x10] sm:$0xf]
      %v282 = vld [vmem:[%s138 + $0x14] sm:$0xf]
      %v283 = vld [vmem:[%s138 + $0x18] sm:$0xf]
      %v284 = vld [vmem:[%s138 + $0x1c] sm:$0xf]
      %v285 = vld [vmem:[%s138 + $0x20] sm:$0xf]
      %v286 = vld [vmem:[%s138 + $0x24] sm:$0xf]
      %v287 = vld [vmem:[%s138 + $0x28] sm:$0xf]
      %v288 = vld [vmem:[%s138 + $0x2c] sm:$0xf]
      %v289 = vld [vmem:[%s138 + $0x30] sm:$0xf]
      %v290 = vld [vmem:[%s138 + $0x34] sm:$0xf]
      %v291 = vld [vmem:[%s138 + $0x38] sm:$0xf]
      %v292 = vld [vmem:[%s138 + $0x3c] sm:$0xf]
      %v293 = vld [vmem:[%s138 + $0x40] sm:$0xf]
      %v294 = vld [vmem:[%s138 + $0x44] sm:$0xf]
      %v295 = vld [vmem:[%s138 + $0x48] sm:$0xf]
      %v296 = vld [vmem:[%s138 + $0x4c] sm:$0xf]
      %v297 = vld [vmem:[%s138 + $0x50] sm:$0xf]
      %v298 = vld [vmem:[%s138 + $0x54] sm:$0xf]
      %v299 = vld [vmem:[%s138 + $0x58] sm:$0xf]
      %v300 = vld [vmem:[%s138 + $0x5c] sm:$0xf]
      %v301 = vld [vmem:[%s138 + $0x60] sm:$0xf]
      %v302 = vld [vmem:[%s138 + $0x64] sm:$0xf]
      %v303 = vld [vmem:[%s138 + $0x68] sm:$0xf]
      %v304 = vld [vmem:[%s138 + $0x6c] sm:$0xf]
      %v305 = vld [vmem:[%s138 + $0x70] sm:$0xf]
      %v306 = vld [vmem:[%s138 + $0x74] sm:$0xf]
      %v307 = vld [vmem:[%s138 + $0x78] sm:$0xf]
      %v308 = vld [vmem:[%s138 + $0x7c] sm:$0xf]
      %v309 = vld [vmem:[%s138 + $0x80] sm:$0xf]
      %v310 = vld [vmem:[%s138 + $0x84] sm:$0xf]
      %v311 = vld [vmem:[%s138 + $0x88] sm:$0xf]
      %v312 = vld [vmem:[%s138 + $0x8c] sm:$0xf]
      %v313 = vld [vmem:[%s138 + $0x90] sm:$0xf]
      %v314 = vld [vmem:[%s138 + $0x94] sm:$0xf]
      %v315 = vld [vmem:[%s138 + $0x98] sm:$0xf]
      %v316 = vld [vmem:[%s138 + $0x9c] sm:$0xf]
      %v317 = vld [vmem:[%s138 + $0xa0] sm:$0xf]
      %v318 = vld [vmem:[%s138 + $0xa4] sm:$0xf]
      %v319 = vld [vmem:[%s138 + $0xa8] sm:$0xf]
      %v320 = vld [vmem:[%s138 + $0xac] sm:$0xf]
      %v321 = vld [vmem:[%s138 + $0xb0] sm:$0xf]
      %v322 = vld [vmem:[%s138 + $0xb4] sm:$0xf]
      %v323 = vld [vmem:[%s138 + $0xb8] sm:$0xf]
      %v324 = vld [vmem:[%s138 + $0xbc] sm:$0xf]
      %v325 = vld [vmem:[%s138 + $0xc0] sm:$0xf]
      %v326 = vld [vmem:[%s138 + $0xc4] sm:$0xf]
      %v327 = vld [vmem:[%s138 + $0xc8] sm:$0xf]
      %v328 = vld [vmem:[%s138 + $0xcc] sm:$0xf]
      %v329 = vld [vmem:[%s138 + $0xd0] sm:$0xf]
      %v330 = vld [vmem:[%s138 + $0xd4] sm:$0xf]
      %v331 = vld [vmem:[%s138 + $0xd8] sm:$0xf]
      %v332 = vld [vmem:[%s138 + $0xdc] sm:$0xf]
      %v333 = vld [vmem:[%s138 + $0xe0] sm:$0xf]
      %v334 = vld [vmem:[%s138 + $0xe4] sm:$0xf]
      %v335 = vld [vmem:[%s138 + $0xe8] sm:$0xf]
      %v336 = vld [vmem:[%s138 + $0xec] sm:$0xf]
      %v337 = vld [vmem:[%s138 + $0xf0] sm:$0xf]
      %v338 = vld [vmem:[%s138 + $0xf4] sm:$0xf]
      %v339 = vld [vmem:[%s138 + $0xf8] sm:$0xf]
      %v340 = vld [vmem:[%s138 + $0xfc] sm:$0xf]
      %v473 = vunpack.c.l.b16 %v145
      %v474 = vunpack.c.h.b16 %v145
      %v475 = vunpack.c.l.b16 %v146
      %v476 = vunpack.c.h.b16 %v146
      %v477 = vunpack.c.l.b16 %v147
      %v478 = vunpack.c.h.b16 %v147
      %v479 = vunpack.c.l.b16 %v148
      %v480 = vunpack.c.h.b16 %v148
      %v481 = vunpack.c.l.b16 %v149
      %v482 = vunpack.c.h.b16 %v149
      %v483 = vunpack.c.l.b16 %v150
      %v484 = vunpack.c.h.b16 %v150
      %v485 = vunpack.c.l.b16 %v151
      %v486 = vunpack.c.h.b16 %v151
      %v487 = vunpack.c.l.b16 %v152
      %v488 = vunpack.c.h.b16 %v152
      %v489 = vunpack.c.l.b16 %v153
      %v490 = vunpack.c.h.b16 %v153
      %v491 = vunpack.c.l.b16 %v154
      %v492 = vunpack.c.h.b16 %v154
      %v493 = vunpack.c.l.b16 %v155
      %v494 = vunpack.c.h.b16 %v155
      %v495 = vunpack.c.l.b16 %v156
      %v496 = vunpack.c.h.b16 %v156
      %v497 = vunpack.c.l.b16 %v157
      %v498 = vunpack.c.h.b16 %v157
      %v499 = vunpack.c.l.b16 %v158
      %v500 = vunpack.c.h.b16 %v158
      %v501 = vunpack.c.l.b16 %v159
      %v502 = vunpack.c.h.b16 %v159
      %v503 = vunpack.c.l.b16 %v160
      %v504 = vunpack.c.h.b16 %v160
      %v505 = vunpack.c.l.b16 %v161
      %v506 = vunpack.c.h.b16 %v161
      %v507 = vunpack.c.l.b16 %v162
      %v508 = vunpack.c.h.b16 %v162
      %v509 = vunpack.c.l.b16 %v163
      %v510 = vunpack.c.h.b16 %v163
      %v511 = vunpack.c.l.b16 %v164
      %v512 = vunpack.c.h.b16 %v164
      %v513 = vunpack.c.l.b16 %v165
      %v514 = vunpack.c.h.b16 %v165
      %v515 = vunpack.c.l.b16 %v166
      %v516 = vunpack.c.h.b16 %v166
      %v517 = vunpack.c.l.b16 %v167
      %v518 = vunpack.c.h.b16 %v167
      %v519 = vunpack.c.l.b16 %v168
      %v520 = vunpack.c.h.b16 %v168
      %v521 = vunpack.c.l.b16 %v169
      %v522 = vunpack.c.h.b16 %v169
      %v523 = vunpack.c.l.b16 %v170
      %v524 = vunpack.c.h.b16 %v170
      %v525 = vunpack.c.l.b16 %v171
      %v526 = vunpack.c.h.b16 %v171
      %v527 = vunpack.c.l.b16 %v172
      %v528 = vunpack.c.h.b16 %v172
      %v529 = vunpack.c.l.b16 %v173
      %v530 = vunpack.c.h.b16 %v173
      %v531 = vunpack.c.l.b16 %v174
      %v532 = vunpack.c.h.b16 %v174
      %v533 = vunpack.c.l.b16 %v175
      %v534 = vunpack.c.h.b16 %v175
      %v535 = vunpack.c.l.b16 %v176
      %v536 = vunpack.c.h.b16 %v176
      %v537 = vunpack.c.l.b16 %v177
      %v538 = vunpack.c.h.b16 %v177
      %v539 = vunpack.c.l.b16 %v178
      %v540 = vunpack.c.h.b16 %v178
      %v541 = vunpack.c.l.b16 %v179
      %v542 = vunpack.c.h.b16 %v179
      %v543 = vunpack.c.l.b16 %v180
      %v544 = vunpack.c.h.b16 %v180
      %v545 = vunpack.c.l.b16 %v181
      %v546 = vunpack.c.h.b16 %v181
      %v547 = vunpack.c.l.b16 %v182
      %v548 = vunpack.c.h.b16 %v182
      %v549 = vunpack.c.l.b16 %v183
      %v550 = vunpack.c.h.b16 %v183
      %v551 = vunpack.c.l.b16 %v184
      %v552 = vunpack.c.h.b16 %v184
      %v553 = vunpack.c.l.b16 %v185
      %v554 = vunpack.c.h.b16 %v185
      %v555 = vunpack.c.l.b16 %v186
      %v556 = vunpack.c.h.b16 %v186
      %v557 = vunpack.c.l.b16 %v187
      %v558 = vunpack.c.h.b16 %v187
      %v559 = vunpack.c.l.b16 %v188
      %v560 = vunpack.c.h.b16 %v188
      %v561 = vunpack.c.l.b16 %v189
      %v562 = vunpack.c.h.b16 %v189
      %v563 = vunpack.c.l.b16 %v190
      %v564 = vunpack.c.h.b16 %v190
      %v565 = vunpack.c.l.b16 %v191
      %v566 = vunpack.c.h.b16 %v191
      %v567 = vunpack.c.l.b16 %v192
      %v568 = vunpack.c.h.b16 %v192
      %v569 = vunpack.c.l.b16 %v193
      %v570 = vunpack.c.h.b16 %v193
      %v571 = vunpack.c.l.b16 %v194
      %v572 = vunpack.c.h.b16 %v194
      %v573 = vunpack.c.l.b16 %v195
      %v574 = vunpack.c.h.b16 %v195
      %v575 = vunpack.c.l.b16 %v196
      %v576 = vunpack.c.h.b16 %v196
      %v577 = vunpack.c.l.b16 %v197
      %v578 = vunpack.c.h.b16 %v197
      %v579 = vunpack.c.l.b16 %v198
      %v580 = vunpack.c.h.b16 %v198
      %v581 = vunpack.c.l.b16 %v199
      %v582 = vunpack.c.h.b16 %v199
      %v583 = vunpack.c.l.b16 %v200
      %v584 = vunpack.c.h.b16 %v200
      %v585 = vunpack.c.l.b16 %v201
      %v586 = vunpack.c.h.b16 %v201
      %v587 = vunpack.c.l.b16 %v202
      %v588 = vunpack.c.h.b16 %v202
      %v589 = vunpack.c.l.b16 %v203
      %v590 = vunpack.c.h.b16 %v203
      %v591 = vunpack.c.l.b16 %v204
      %v592 = vunpack.c.h.b16 %v204
      %v593 = vunpack.c.l.b16 %v205
      %v594 = vunpack.c.h.b16 %v205
      %v595 = vunpack.c.l.b16 %v206
      %v596 = vunpack.c.h.b16 %v206
      %v597 = vunpack.c.l.b16 %v207
      %v598 = vunpack.c.h.b16 %v207
      %v599 = vunpack.c.l.b16 %v208
      %v600 = vunpack.c.h.b16 %v208
      %v601 = vunpack.c.l.b16 %v209
      %v602 = vunpack.c.h.b16 %v209
      %v603 = vunpack.c.l.b16 %v210
      %v604 = vunpack.c.h.b16 %v210
      %v605 = vunpack.c.l.b16 %v211
      %v606 = vunpack.c.h.b16 %v211
      %v607 = vunpack.c.l.b16 %v212
      %v608 = vunpack.c.h.b16 %v212
      %v609 = vunpack.c.l.b16 %v213
      %v610 = vunpack.c.h.b16 %v213
      %v611 = vunpack.c.l.b16 %v214
      %v612 = vunpack.c.h.b16 %v214
      %v613 = vunpack.c.l.b16 %v215
      %v614 = vunpack.c.h.b16 %v215
      %v615 = vunpack.c.l.b16 %v216
      %v616 = vunpack.c.h.b16 %v216
      %v617 = vunpack.c.l.b16 %v217
      %v618 = vunpack.c.h.b16 %v217
      %v619 = vunpack.c.l.b16 %v218
      %v620 = vunpack.c.h.b16 %v218
      %v621 = vunpack.c.l.b16 %v219
      %v622 = vunpack.c.h.b16 %v219
      %v623 = vunpack.c.l.b16 %v220
      %v624 = vunpack.c.h.b16 %v220
      %v625 = vunpack.c.l.b16 %v221
      %v626 = vunpack.c.h.b16 %v221
      %v627 = vunpack.c.l.b16 %v222
      %v628 = vunpack.c.h.b16 %v222
      %v629 = vunpack.c.l.b16 %v223
      %v630 = vunpack.c.h.b16 %v223
      %v631 = vunpack.c.l.b16 %v224
      %v632 = vunpack.c.h.b16 %v224
      %v633 = vunpack.c.l.b16 %v225
      %v634 = vunpack.c.h.b16 %v225
      %v635 = vunpack.c.l.b16 %v226
      %v636 = vunpack.c.h.b16 %v226
      %v637 = vunpack.c.l.b16 %v227
      %v638 = vunpack.c.h.b16 %v227
      %v639 = vunpack.c.l.b16 %v228
      %v640 = vunpack.c.h.b16 %v228
      %v641 = vunpack.c.l.b16 %v229
      %v642 = vunpack.c.h.b16 %v229
      %v643 = vunpack.c.l.b16 %v230
      %v644 = vunpack.c.h.b16 %v230
      %v645 = vunpack.c.l.b16 %v231
      %v646 = vunpack.c.h.b16 %v231
      %v647 = vunpack.c.l.b16 %v232
      %v648 = vunpack.c.h.b16 %v232
      %v649 = vunpack.c.l.b16 %v233
      %v650 = vunpack.c.h.b16 %v233
      %v651 = vunpack.c.l.b16 %v234
      %v652 = vunpack.c.h.b16 %v234
      %v653 = vunpack.c.l.b16 %v235
      %v654 = vunpack.c.h.b16 %v235
      %v655 = vunpack.c.l.b16 %v236
      %v656 = vunpack.c.h.b16 %v236
      %v657 = vunpack.c.l.b16 %v237
      %v658 = vunpack.c.h.b16 %v237
      %v659 = vunpack.c.l.b16 %v238
      %v660 = vunpack.c.h.b16 %v238
      %v661 = vunpack.c.l.b16 %v239
      %v662 = vunpack.c.h.b16 %v239
      %v663 = vunpack.c.l.b16 %v240
      %v664 = vunpack.c.h.b16 %v240
      %v665 = vunpack.c.l.b16 %v241
      %v666 = vunpack.c.h.b16 %v241
      %v667 = vunpack.c.l.b16 %v242
      %v668 = vunpack.c.h.b16 %v242
      %v669 = vunpack.c.l.b16 %v243
      %v670 = vunpack.c.h.b16 %v243
      %v671 = vunpack.c.l.b16 %v244
      %v672 = vunpack.c.h.b16 %v244
      %v673 = vunpack.c.l.b16 %v245
      %v674 = vunpack.c.h.b16 %v245
      %v675 = vunpack.c.l.b16 %v246
      %v676 = vunpack.c.h.b16 %v246
      %v677 = vunpack.c.l.b16 %v247
      %v678 = vunpack.c.h.b16 %v247
      %v679 = vunpack.c.l.b16 %v248
      %v680 = vunpack.c.h.b16 %v248
      %v681 = vunpack.c.l.b16 %v249
      %v682 = vunpack.c.h.b16 %v249
      %v683 = vunpack.c.l.b16 %v250
      %v684 = vunpack.c.h.b16 %v250
      %v685 = vunpack.c.l.b16 %v251
      %v686 = vunpack.c.h.b16 %v251
      %v687 = vunpack.c.l.b16 %v252
      %v688 = vunpack.c.h.b16 %v252
      %v689 = vunpack.c.l.b16 %v253
      %v690 = vunpack.c.h.b16 %v253
      %v691 = vunpack.c.l.b16 %v254
      %v692 = vunpack.c.h.b16 %v254
      %v693 = vunpack.c.l.b16 %v255
      %v694 = vunpack.c.h.b16 %v255
      %v695 = vunpack.c.l.b16 %v256
      %v696 = vunpack.c.h.b16 %v256
      %v697 = vunpack.c.l.b16 %v257
      %v698 = vunpack.c.h.b16 %v257
      %v699 = vunpack.c.l.b16 %v258
      %v700 = vunpack.c.h.b16 %v258
      %v701 = vunpack.c.l.b16 %v259
      %v702 = vunpack.c.h.b16 %v259
      %v703 = vunpack.c.l.b16 %v260
      %v704 = vunpack.c.h.b16 %v260
      %v705 = vunpack.c.l.b16 %v261
      %v706 = vunpack.c.h.b16 %v261
      %v707 = vunpack.c.l.b16 %v262
      %v708 = vunpack.c.h.b16 %v262
      %v709 = vunpack.c.l.b16 %v263
      %v710 = vunpack.c.h.b16 %v263
      %v711 = vunpack.c.l.b16 %v264
      %v712 = vunpack.c.h.b16 %v264
      %v713 = vunpack.c.l.b16 %v265
      %v714 = vunpack.c.h.b16 %v265
      %v715 = vunpack.c.l.b16 %v266
      %v716 = vunpack.c.h.b16 %v266
      %v717 = vunpack.c.l.b16 %v267
      %v718 = vunpack.c.h.b16 %v267
      %v719 = vunpack.c.l.b16 %v268
      %v720 = vunpack.c.h.b16 %v268
      %v721 = vunpack.c.l.b16 %v269
      %v722 = vunpack.c.h.b16 %v269
      %v723 = vunpack.c.l.b16 %v270
      %v724 = vunpack.c.h.b16 %v270
      %v725 = vunpack.c.l.b16 %v271
      %v726 = vunpack.c.h.b16 %v271
      %v727 = vunpack.c.l.b16 %v272
      %v728 = vunpack.c.h.b16 %v272
      %v729 = vunpack.c.l.b16 %v273
      %v730 = vunpack.c.h.b16 %v273
      %v731 = vunpack.c.l.b16 %v274
      %v732 = vunpack.c.h.b16 %v274
      %v733 = vunpack.c.l.b16 %v275
      %v734 = vunpack.c.h.b16 %v275
      %v735 = vunpack.c.l.b16 %v276
      %v736 = vunpack.c.h.b16 %v276
      %v737 = vpack.c.b16 %v477, %v473
      %v738 = vpack.c.b16 %v478, %v474
      %v739 = vpack.c.b16 %v479, %v475
      %v740 = vpack.c.b16 %v480, %v476
      %v741 = vpack.c.b16 %v485, %v481
      %v742 = vpack.c.b16 %v486, %v482
      %v743 = vpack.c.b16 %v487, %v483
      %v744 = vpack.c.b16 %v488, %v484
      %v745 = vpack.c.b16 %v493, %v489
      %v746 = vpack.c.b16 %v494, %v490
      %v747 = vpack.c.b16 %v495, %v491
      %v748 = vpack.c.b16 %v496, %v492
      %v749 = vpack.c.b16 %v501, %v497
      %v750 = vpack.c.b16 %v502, %v498
      %v751 = vpack.c.b16 %v503, %v499
      %v752 = vpack.c.b16 %v504, %v500
      %v753 = vpack.c.b16 %v509, %v505
      %v754 = vpack.c.b16 %v510, %v506
      %v755 = vpack.c.b16 %v511, %v507
      %v756 = vpack.c.b16 %v512, %v508
      %v757 = vpack.c.b16 %v517, %v513
      %v758 = vpack.c.b16 %v518, %v514
      %v759 = vpack.c.b16 %v519, %v515
      %v760 = vpack.c.b16 %v520, %v516
      %v761 = vpack.c.b16 %v525, %v521
      %v762 = vpack.c.b16 %v526, %v522
      %v763 = vpack.c.b16 %v527, %v523
      %v764 = vpack.c.b16 %v528, %v524
      %v765 = vpack.c.b16 %v533, %v529
      %v766 = vpack.c.b16 %v534, %v530
      %v767 = vpack.c.b16 %v535, %v531
      %v768 = vpack.c.b16 %v536, %v532
      %v769 = vpack.c.b16 %v541, %v537
      %v770 = vpack.c.b16 %v542, %v538
      %v771 = vpack.c.b16 %v543, %v539
      %v772 = vpack.c.b16 %v544, %v540
      %v773 = vpack.c.b16 %v549, %v545
      %v774 = vpack.c.b16 %v550, %v546
      %v775 = vpack.c.b16 %v551, %v547
      %v776 = vpack.c.b16 %v552, %v548
      %v777 = vpack.c.b16 %v557, %v553
      %v778 = vpack.c.b16 %v558, %v554
      %v779 = vpack.c.b16 %v559, %v555
      %v780 = vpack.c.b16 %v560, %v556
      %v781 = vpack.c.b16 %v565, %v561
      %v782 = vpack.c.b16 %v566, %v562
      %v783 = vpack.c.b16 %v567, %v563
      %v784 = vpack.c.b16 %v568, %v564
      %v785 = vpack.c.b16 %v573, %v569
      %v786 = vpack.c.b16 %v574, %v570
      %v787 = vpack.c.b16 %v575, %v571
      %v788 = vpack.c.b16 %v576, %v572
      %v789 = vpack.c.b16 %v581, %v577
      %v790 = vpack.c.b16 %v582, %v578
      %v791 = vpack.c.b16 %v583, %v579
      %v792 = vpack.c.b16 %v584, %v580
      %v793 = vpack.c.b16 %v589, %v585
      %v794 = vpack.c.b16 %v590, %v586
      %v795 = vpack.c.b16 %v591, %v587
      %v796 = vpack.c.b16 %v592, %v588
      %v797 = vpack.c.b16 %v597, %v593
      %v798 = vpack.c.b16 %v598, %v594
      %v799 = vpack.c.b16 %v599, %v595
      %v800 = vpack.c.b16 %v600, %v596
      %v801 = vpack.c.b16 %v605, %v601
      %v802 = vpack.c.b16 %v606, %v602
      %v803 = vpack.c.b16 %v607, %v603
      %v804 = vpack.c.b16 %v608, %v604
      %v805 = vpack.c.b16 %v613, %v609
      %v806 = vpack.c.b16 %v614, %v610
      %v807 = vpack.c.b16 %v615, %v611
      %v808 = vpack.c.b16 %v616, %v612
      %v809 = vpack.c.b16 %v621, %v617
      %v810 = vpack.c.b16 %v622, %v618
      %v811 = vpack.c.b16 %v623, %v619
      %v812 = vpack.c.b16 %v624, %v620
      %v813 = vpack.c.b16 %v629, %v625
      %v814 = vpack.c.b16 %v630, %v626
      %v815 = vpack.c.b16 %v631, %v627
      %v816 = vpack.c.b16 %v632, %v628
      %v817 = vpack.c.b16 %v637, %v633
      %v818 = vpack.c.b16 %v638, %v634
      %v819 = vpack.c.b16 %v639, %v635
      %v820 = vpack.c.b16 %v640, %v636
      %v821 = vpack.c.b16 %v645, %v641
      %v822 = vpack.c.b16 %v646, %v642
      %v823 = vpack.c.b16 %v647, %v643
      %v824 = vpack.c.b16 %v648, %v644
      %v825 = vpack.c.b16 %v653, %v649
      %v826 = vpack.c.b16 %v654, %v650
      %v827 = vpack.c.b16 %v655, %v651
      %v828 = vpack.c.b16 %v656, %v652
      %v829 = vpack.c.b16 %v661, %v657
      %v830 = vpack.c.b16 %v662, %v658
      %v831 = vpack.c.b16 %v663, %v659
      %v832 = vpack.c.b16 %v664, %v660
      %v833 = vpack.c.b16 %v669, %v665
      %v834 = vpack.c.b16 %v670, %v666
      %v835 = vpack.c.b16 %v671, %v667
      %v836 = vpack.c.b16 %v672, %v668
      %v837 = vpack.c.b16 %v677, %v673
      %v838 = vpack.c.b16 %v678, %v674
      %v839 = vpack.c.b16 %v679, %v675
      %v840 = vpack.c.b16 %v680, %v676
      %v841 = vpack.c.b16 %v685, %v681
      %v842 = vpack.c.b16 %v686, %v682
      %v843 = vpack.c.b16 %v687, %v683
      %v844 = vpack.c.b16 %v688, %v684
      %v845 = vpack.c.b16 %v693, %v689
      %v846 = vpack.c.b16 %v694, %v690
      %v847 = vpack.c.b16 %v695, %v691
      %v848 = vpack.c.b16 %v696, %v692
      %v849 = vpack.c.b16 %v701, %v697
      %v850 = vpack.c.b16 %v702, %v698
      %v851 = vpack.c.b16 %v703, %v699
      %v852 = vpack.c.b16 %v704, %v700
      %v853 = vpack.c.b16 %v709, %v705
      %v854 = vpack.c.b16 %v710, %v706
      %v855 = vpack.c.b16 %v711, %v707
      %v856 = vpack.c.b16 %v712, %v708
      %v857 = vpack.c.b16 %v717, %v713
      %v858 = vpack.c.b16 %v718, %v714
      %v859 = vpack.c.b16 %v719, %v715
      %v860 = vpack.c.b16 %v720, %v716
      %v861 = vpack.c.b16 %v725, %v721
      %v862 = vpack.c.b16 %v726, %v722
      %v863 = vpack.c.b16 %v727, %v723
      %v864 = vpack.c.b16 %v728, %v724
      %v865 = vpack.c.b16 %v733, %v729
      %v866 = vpack.c.b16 %v734, %v730
      %v867 = vpack.c.b16 %v735, %v731
      %v868 = vpack.c.b16 %v736, %v732
      %v1065 = vunpack.c.l.b16 %v277
      %v1066 = vunpack.c.l.b16 %v278
      %v1067 = vunpack.c.l.b16 %v279
      %v1068 = vunpack.c.l.b16 %v280
      %v1069 = vunpack.c.l.b16 %v281
      %v1070 = vunpack.c.l.b16 %v282
      %v1071 = vunpack.c.l.b16 %v283
      %v1072 = vunpack.c.l.b16 %v284
      %v1073 = vunpack.c.l.b16 %v285
      %v1074 = vunpack.c.l.b16 %v286
      %v1075 = vunpack.c.l.b16 %v287
      %v1076 = vunpack.c.l.b16 %v288
      %v1077 = vunpack.c.l.b16 %v289
      %v1078 = vunpack.c.l.b16 %v290
      %v1079 = vunpack.c.l.b16 %v291
      %v1080 = vunpack.c.l.b16 %v292
      %v1081 = vunpack.c.l.b16 %v293
      %v1082 = vunpack.c.l.b16 %v294
      %v1083 = vunpack.c.l.b16 %v295
      %v1084 = vunpack.c.l.b16 %v296
      %v1085 = vunpack.c.l.b16 %v297
      %v1086 = vunpack.c.l.b16 %v298
      %v1087 = vunpack.c.l.b16 %v299
      %v1088 = vunpack.c.l.b16 %v300
      %v1089 = vunpack.c.l.b16 %v301
      %v1090 = vunpack.c.l.b16 %v302
      %v1091 = vunpack.c.l.b16 %v303
      %v1092 = vunpack.c.l.b16 %v304
      %v1093 = vunpack.c.l.b16 %v305
      %v1094 = vunpack.c.l.b16 %v306
      %v1095 = vunpack.c.l.b16 %v307
      %v1096 = vunpack.c.l.b16 %v308
      %v1097 = vunpack.c.l.b16 %v309
      %v1098 = vunpack.c.l.b16 %v310
      %v1099 = vunpack.c.l.b16 %v311
      %v1100 = vunpack.c.l.b16 %v312
      %v1101 = vunpack.c.l.b16 %v313
      %v1102 = vunpack.c.l.b16 %v314
      %v1103 = vunpack.c.l.b16 %v315
      %v1104 = vunpack.c.l.b16 %v316
      %v1105 = vunpack.c.l.b16 %v317
      %v1106 = vunpack.c.l.b16 %v318
      %v1107 = vunpack.c.l.b16 %v319
      %v1108 = vunpack.c.l.b16 %v320
      %v1109 = vunpack.c.l.b16 %v321
      %v1110 = vunpack.c.l.b16 %v322
      %v1111 = vunpack.c.l.b16 %v323
      %v1112 = vunpack.c.l.b16 %v324
      %v1113 = vunpack.c.l.b16 %v325
      %v1114 = vunpack.c.l.b16 %v326
      %v1115 = vunpack.c.l.b16 %v327
      %v1116 = vunpack.c.l.b16 %v328
      %v1117 = vunpack.c.l.b16 %v329
      %v1118 = vunpack.c.l.b16 %v330
      %v1119 = vunpack.c.l.b16 %v331
      %v1120 = vunpack.c.l.b16 %v332
      %v1121 = vunpack.c.l.b16 %v333
      %v1122 = vunpack.c.l.b16 %v334
      %v1123 = vunpack.c.l.b16 %v335
      %v1124 = vunpack.c.l.b16 %v336
      %v1125 = vunpack.c.l.b16 %v337
      %v1126 = vunpack.c.l.b16 %v338
      %v1127 = vunpack.c.l.b16 %v339
      %v1128 = vunpack.c.l.b16 %v340
      %v1129 = vpack.c.b16 %v1066, %v1065
      %v1130 = vpack.c.b16 %v1068, %v1067
      %v1131 = vpack.c.b16 %v1070, %v1069
      %v1132 = vpack.c.b16 %v1072, %v1071
      %v1133 = vpack.c.b16 %v1074, %v1073
      %v1134 = vpack.c.b16 %v1076, %v1075
      %v1135 = vpack.c.b16 %v1078, %v1077
      %v1136 = vpack.c.b16 %v1080, %v1079
      %v1137 = vpack.c.b16 %v1082, %v1081
      %v1138 = vpack.c.b16 %v1084, %v1083
      %v1139 = vpack.c.b16 %v1086, %v1085
      %v1140 = vpack.c.b16 %v1088, %v1087
      %v1141 = vpack.c.b16 %v1090, %v1089
      %v1142 = vpack.c.b16 %v1092, %v1091
      %v1143 = vpack.c.b16 %v1094, %v1093
      %v1144 = vpack.c.b16 %v1096, %v1095
      %v1145 = vpack.c.b16 %v1098, %v1097
      %v1146 = vpack.c.b16 %v1100, %v1099
      %v1147 = vpack.c.b16 %v1102, %v1101
      %v1148 = vpack.c.b16 %v1104, %v1103
      %v1149 = vpack.c.b16 %v1106, %v1105
      %v1150 = vpack.c.b16 %v1108, %v1107
      %v1151 = vpack.c.b16 %v1110, %v1109
      %v1152 = vpack.c.b16 %v1112, %v1111
      %v1153 = vpack.c.b16 %v1114, %v1113
      %v1154 = vpack.c.b16 %v1116, %v1115
      %v1155 = vpack.c.b16 %v1118, %v1117
      %v1156 = vpack.c.b16 %v1120, %v1119
      %v1157 = vpack.c.b16 %v1122, %v1121
      %v1158 = vpack.c.b16 %v1124, %v1123
      %v1159 = vpack.c.b16 %v1126, %v1125
      %v1160 = vpack.c.b16 %v1128, %v1127
      %1193 = vmatprep.subr.bf16.mxu0 0
      %1194 = vmatpush1.bf16.msra.mxu0 %v1129
      %1195 = vmatprep.subr.bf16.mxu0 0
      %1196 = vmatpush1.bf16.msra.mxu0 %v1130
      %1197 = vmatprep.subr.bf16.mxu0 0
      %1198 = vmatpush1.bf16.msra.mxu0 %v1131
      %1199 = vmatprep.subr.bf16.mxu0 0
      %1200 = vmatpush1.bf16.msra.mxu0 %v1132
      %1201 = vmatprep.subr.bf16.mxu0 0
      %1202 = vmatpush1.bf16.msra.mxu0 %v1133
      %1203 = vmatprep.subr.bf16.mxu0 0
      %1204 = vmatpush1.bf16.msra.mxu0 %v1134
      %1205 = vmatprep.subr.bf16.mxu0 0
      %1206 = vmatpush1.bf16.msra.mxu0 %v1135
      %1207 = vmatprep.subr.bf16.mxu0 0
      %1208 = vmatpush1.bf16.msra.mxu0 %v1136
      %1209 = vmatprep.subr.bf16.mxu0 0
      %1210 = vmatpush1.bf16.msra.mxu0 %v1137
      %1211 = vmatprep.subr.bf16.mxu0 0
      %1212 = vmatpush1.bf16.msra.mxu0 %v1138
      %1213 = vmatprep.subr.bf16.mxu0 0
      %1214 = vmatpush1.bf16.msra.mxu0 %v1139
      %1215 = vmatprep.subr.bf16.mxu0 0
      %1216 = vmatpush1.bf16.msra.mxu0 %v1140
      %1217 = vmatprep.subr.bf16.mxu0 0
      %1218 = vmatpush1.bf16.msra.mxu0 %v1141
      %1219 = vmatprep.subr.bf16.mxu0 0
      %1220 = vmatpush1.bf16.msra.mxu0 %v1142
      %1221 = vmatprep.subr.bf16.mxu0 0
      %1222 = vmatpush1.bf16.msra.mxu0 %v1143
      %1223 = vmatprep.subr.bf16.mxu0 0
      %1224 = vmatpush1.bf16.msra.mxu0 %v1144
      %1225 = vmatprep.mubr.bf16.mxu0 %v738
      %1226 = vmatmul.mubr.bf16.gmra.mrb[0].mxu0 %v737
      %v1227 = vpop.f32.mrb[0].mxu0
      %v1228 = vadd.f32 0.0, %v1227
      %v1229 = vpop.f32.mrb[0].mxu0
      %v1230 = vpop.f32.mrb[0].mxu0
      %v1231 = vadd.f32 0.0, %v1230
      %v1232 = vpop.f32.mrb[0].mxu0
      %1233 = vmatprep.mubr.bf16.mxu0 %v742
      %1234 = vmatmul.mubr.bf16.gmra.mrb[0].mxu0 %v741
      %v1235 = vpop.f32.mrb[0].mxu0
      %v1236 = vadd.f32 0.0, %v1235
      %v1237 = vpop.f32.mrb[0].mxu0
      %v1238 = vpop.f32.mrb[0].mxu0
      %v1239 = vadd.f32 0.0, %v1238
      %v1240 = vpop.f32.mrb[0].mxu0
      %1241 = vmatprep.mubr.bf16.mxu0 %v746
      %1242 = vmatmul.mubr.bf16.gmra.mrb[0].mxu0 %v745
      %v1243 = vpop.f32.mrb[0].mxu0
      %v1244 = vadd.f32 0.0, %v1243
      %v1245 = vpop.f32.mrb[0].mxu0
      %v1246 = vpop.f32.mrb[0].mxu0
      %v1247 = vadd.f32 0.0, %v1246
      %v1248 = vpop.f32.mrb[0].mxu0
      %1249 = vmatprep.mubr.bf16.mxu0 %v750
      %1250 = vmatmul.mubr.bf16.gmra.mrb[0].mxu0 %v749
      %v1251 = vpop.f32.mrb[0].mxu0
      %v1252 = vadd.f32 0.0, %v1251
      %v1253 = vpop.f32.mrb[0].mxu0
      %v1254 = vpop.f32.mrb[0].mxu0
      %v1255 = vadd.f32 0.0, %v1254
      %v1256 = vpop.f32.mrb[0].mxu0
      %1257 = vmatprep.mubr.bf16.mxu0 %v754
      %1258 = vmatmul.mubr.bf16.gmra.mrb[0].mxu0 %v753
      %v1259 = vpop.f32.mrb[0].mxu0
      %v1260 = vadd.f32 0.0, %v1259
      %v1261 = vpop.f32.mrb[0].mxu0
      %v1262 = vpop.f32.mrb[0].mxu0
      %v1263 = vadd.f32 0.0, %v1262
      %v1264 = vpop.f32.mrb[0].mxu0
      %1265 = vmatprep.mubr.bf16.mxu0 %v758
      %1266 = vmatmul.mubr.bf16.gmra.mrb[0].mxu0 %v757
      %v1267 = vpop.f32.mrb[0].mxu0
      %v1268 = vadd.f32 0.0, %v1267
      %v1269 = vpop.f32.mrb[0].mxu0
      %v1270 = vpop.f32.mrb[0].mxu0
      %v1271 = vadd.f32 0.0, %v1270
      %v1272 = vpop.f32.mrb[0].mxu0
      %1273 = vmatprep.mubr.bf16.mxu0 %v762
      %1274 = vmatmul.mubr.bf16.gmra.mrb[0].mxu0 %v761
      %v1275 = vpop.f32.mrb[0].mxu0
      %v1276 = vadd.f32 0.0, %v1275
      %v1277 = vpop.f32.mrb[0].mxu0
      %v1278 = vpop.f32.mrb[0].mxu0
      %v1279 = vadd.f32 0.0, %v1278
      %v1280 = vpop.f32.mrb[0].mxu0
      %1281 = vmatprep.mubr.bf16.mxu0 %v766
      %1282 = vmatmul.mubr.bf16.gmra.mrb[0].mxu0 %v765
      %v1283 = vpop.f32.mrb[0].mxu0
      %v1284 = vadd.f32 0.0, %v1283
      %v1285 = vpop.f32.mrb[0].mxu0
      %v1286 = vpop.f32.mrb[0].mxu0
      %v1287 = vadd.f32 0.0, %v1286
      %v1288 = vpop.f32.mrb[0].mxu0
      %1289 = vmatprep.mubr.bf16.mxu0 %v770
      %1290 = vmatmul.mubr.bf16.gmra.mrb[0].mxu0 %v769
      %v1291 = vpop.f32.mrb[0].mxu0
      %v1292 = vadd.f32 0.0, %v1291
      %v1293 = vpop.f32.mrb[0].mxu0
      %v1294 = vpop.f32.mrb[0].mxu0
      %v1295 = vadd.f32 0.0, %v1294
      %v1296 = vpop.f32.mrb[0].mxu0
      %1297 = vmatprep.mubr.bf16.mxu0 %v774
      %1298 = vmatmul.mubr.bf16.gmra.mrb[0].mxu0 %v773
      %v1299 = vpop.f32.mrb[0].mxu0
      %v1300 = vadd.f32 0.0, %v1299
      %v1301 = vpop.f32.mrb[0].mxu0
      %v1302 = vpop.f32.mrb[0].mxu0
      %v1303 = vadd.f32 0.0, %v1302
      %v1304 = vpop.f32.mrb[0].mxu0
      %1305 = vmatprep.mubr.bf16.mxu0 %v778
      %1306 = vmatmul.mubr.bf16.gmra.mrb[0].mxu0 %v777
      %v1307 = vpop.f32.mrb[0].mxu0
      %v1308 = vadd.f32 0.0, %v1307
      %v1309 = vpop.f32.mrb[0].mxu0
      %v1310 = vpop.f32.mrb[0].mxu0
      %v1311 = vadd.f32 0.0, %v1310
      %v1312 = vpop.f32.mrb[0].mxu0
      %1313 = vmatprep.mubr.bf16.mxu0 %v782
      %1314 = vmatmul.mubr.bf16.gmra.mrb[0].mxu0 %v781
      %v1315 = vpop.f32.mrb[0].mxu0
      %v1316 = vadd.f32 0.0, %v1315
      %v1317 = vpop.f32.mrb[0].mxu0
      %v1318 = vpop.f32.mrb[0].mxu0
      %v1319 = vadd.f32 0.0, %v1318
      %v1320 = vpop.f32.mrb[0].mxu0
      %1321 = vmatprep.mubr.bf16.mxu0 %v786
      %1322 = vmatmul.mubr.bf16.gmra.mrb[0].mxu0 %v785
      %v1323 = vpop.f32.mrb[0].mxu0
      %v1324 = vadd.f32 0.0, %v1323
      %v1325 = vpop.f32.mrb[0].mxu0
      %v1326 = vpop.f32.mrb[0].mxu0
      %v1327 = vadd.f32 0.0, %v1326
      %v1328 = vpop.f32.mrb[0].mxu0
      %1329 = vmatprep.mubr.bf16.mxu0 %v790
      %1330 = vmatmul.mubr.bf16.gmra.mrb[0].mxu0 %v789
      %v1331 = vpop.f32.mrb[0].mxu0
      %v1332 = vadd.f32 0.0, %v1331
      %v1333 = vpop.f32.mrb[0].mxu0
      %v1334 = vpop.f32.mrb[0].mxu0
      %v1335 = vadd.f32 0.0, %v1334
      %v1336 = vpop.f32.mrb[0].mxu0
      %1337 = vmatprep.mubr.bf16.mxu0 %v794
      %1338 = vmatmul.mubr.bf16.gmra.mrb[0].mxu0 %v793
      %v1339 = vpop.f32.mrb[0].mxu0
      %v1340 = vadd.f32 0.0, %v1339
      %v1341 = vpop.f32.mrb[0].mxu0
      %v1342 = vpop.f32.mrb[0].mxu0
      %v1343 = vadd.f32 0.0, %v1342
      %v1344 = vpop.f32.mrb[0].mxu0
      %1345 = vmatprep.mubr.bf16.mxu0 %v798
      %1346 = vmatmul.mubr.bf16.gmra.mrb[0].mxu0 %v797
      %v1347 = vpop.f32.mrb[0].mxu0
      %v1348 = vadd.f32 0.0, %v1347
      %v1349 = vpop.f32.mrb[0].mxu0
      %v1350 = vpop.f32.mrb[0].mxu0
      %v1351 = vadd.f32 0.0, %v1350
      %v1352 = vpop.f32.mrb[0].mxu0
      %1353 = vmatprep.mubr.bf16.mxu0 %v802
      %1354 = vmatmul.mubr.bf16.gmra.mrb[0].mxu0 %v801
      %v1355 = vpop.f32.mrb[0].mxu0
      %v1356 = vadd.f32 0.0, %v1355
      %v1357 = vpop.f32.mrb[0].mxu0
      %v1358 = vpop.f32.mrb[0].mxu0
      %v1359 = vadd.f32 0.0, %v1358
      %v1360 = vpop.f32.mrb[0].mxu0
      %1361 = vmatprep.mubr.bf16.mxu0 %v806
      %1362 = vmatmul.mubr.bf16.gmra.mrb[0].mxu0 %v805
      %v1363 = vpop.f32.mrb[0].mxu0
      %v1364 = vadd.f32 0.0, %v1363
      %v1365 = vpop.f32.mrb[0].mxu0
      %v1366 = vpop.f32.mrb[0].mxu0
      %v1367 = vadd.f32 0.0, %v1366
      %v1368 = vpop.f32.mrb[0].mxu0
      %1369 = vmatprep.mubr.bf16.mxu0 %v810
      %1370 = vmatmul.mubr.bf16.gmra.mrb[0].mxu0 %v809
      %v1371 = vpop.f32.mrb[0].mxu0
      %v1372 = vadd.f32 0.0, %v1371
      %v1373 = vpop.f32.mrb[0].mxu0
      %v1374 = vpop.f32.mrb[0].mxu0
      %v1375 = vadd.f32 0.0, %v1374
      %v1376 = vpop.f32.mrb[0].mxu0
      %1377 = vmatprep.mubr.bf16.mxu0 %v814
      %1378 = vmatmul.mubr.bf16.gmra.mrb[0].mxu0 %v813
      %v1379 = vpop.f32.mrb[0].mxu0
      %v1380 = vadd.f32 0.0, %v1379
      %v1381 = vpop.f32.mrb[0].mxu0
      %v1382 = vpop.f32.mrb[0].mxu0
      %v1383 = vadd.f32 0.0, %v1382
      %v1384 = vpop.f32.mrb[0].mxu0
      %1385 = vmatprep.mubr.bf16.mxu0 %v818
      %1386 = vmatmul.mubr.bf16.gmra.mrb[0].mxu0 %v817
      %v1387 = vpop.f32.mrb[0].mxu0
      %v1388 = vadd.f32 0.0, %v1387
      %v1389 = vpop.f32.mrb[0].mxu0
      %v1390 = vpop.f32.mrb[0].mxu0
      %v1391 = vadd.f32 0.0, %v1390
      %v1392 = vpop.f32.mrb[0].mxu0
      %1393 = vmatprep.mubr.bf16.mxu0 %v822
      %1394 = vmatmul.mubr.bf16.gmra.mrb[0].mxu0 %v821
      %v1395 = vpop.f32.mrb[0].mxu0
      %v1396 = vadd.f32 0.0, %v1395
      %v1397 = vpop.f32.mrb[0].mxu0
      %v1398 = vpop.f32.mrb[0].mxu0
      %v1399 = vadd.f32 0.0, %v1398
      %v1400 = vpop.f32.mrb[0].mxu0
      %1401 = vmatprep.mubr.bf16.mxu0 %v826
      %1402 = vmatmul.mubr.bf16.gmra.mrb[0].mxu0 %v825
      %v1403 = vpop.f32.mrb[0].mxu0
      %v1404 = vadd.f32 0.0, %v1403
      %v1405 = vpop.f32.mrb[0].mxu0
      %v1406 = vpop.f32.mrb[0].mxu0
      %v1407 = vadd.f32 0.0, %v1406
      %v1408 = vpop.f32.mrb[0].mxu0
      %1409 = vmatprep.mubr.bf16.mxu0 %v830
      %1410 = vmatmul.mubr.bf16.gmra.mrb[0].mxu0 %v829
      %v1411 = vpop.f32.mrb[0].mxu0
      %v1412 = vadd.f32 0.0, %v1411
      %v1413 = vpop.f32.mrb[0].mxu0
      %v1414 = vpop.f32.mrb[0].mxu0
      %v1415 = vadd.f32 0.0, %v1414
      %v1416 = vpop.f32.mrb[0].mxu0
      %1417 = vmatprep.mubr.bf16.mxu0 %v834
      %1418 = vmatmul.mubr.bf16.gmra.mrb[0].mxu0 %v833
      %v1419 = vpop.f32.mrb[0].mxu0
      %v1420 = vadd.f32 0.0, %v1419
      %v1421 = vpop.f32.mrb[0].mxu0
      %v1422 = vpop.f32.mrb[0].mxu0
      %v1423 = vadd.f32 0.0, %v1422
      %v1424 = vpop.f32.mrb[0].mxu0
      %1425 = vmatprep.mubr.bf16.mxu0 %v838
      %1426 = vmatmul.mubr.bf16.gmra.mrb[0].mxu0 %v837
      %v1427 = vpop.f32.mrb[0].mxu0
      %v1428 = vadd.f32 0.0, %v1427
      %v1429 = vpop.f32.mrb[0].mxu0
      %v1430 = vpop.f32.mrb[0].mxu0
      %v1431 = vadd.f32 0.0, %v1430
      %v1432 = vpop.f32.mrb[0].mxu0
      %1433 = vmatprep.mubr.bf16.mxu0 %v842
      %1434 = vmatmul.mubr.bf16.gmra.mrb[0].mxu0 %v841
      %v1435 = vpop.f32.mrb[0].mxu0
      %v1436 = vadd.f32 0.0, %v1435
      %v1437 = vpop.f32.mrb[0].mxu0
      %v1438 = vpop.f32.mrb[0].mxu0
      %v1439 = vadd.f32 0.0, %v1438
      %v1440 = vpop.f32.mrb[0].mxu0
      %1441 = vmatprep.mubr.bf16.mxu0 %v846
      %1442 = vmatmul.mubr.bf16.gmra.mrb[0].mxu0 %v845
      %v1443 = vpop.f32.mrb[0].mxu0
      %v1444 = vadd.f32 0.0, %v1443
      %v1445 = vpop.f32.mrb[0].mxu0
      %v1446 = vpop.f32.mrb[0].mxu0
      %v1447 = vadd.f32 0.0, %v1446
      %v1448 = vpop.f32.mrb[0].mxu0
      %1449 = vmatprep.mubr.bf16.mxu0 %v850
      %1450 = vmatmul.mubr.bf16.gmra.mrb[0].mxu0 %v849
      %v1451 = vpop.f32.mrb[0].mxu0
      %v1452 = vadd.f32 0.0, %v1451
      %v1453 = vpop.f32.mrb[0].mxu0
      %v1454 = vpop.f32.mrb[0].mxu0
      %v1455 = vadd.f32 0.0, %v1454
      %v1456 = vpop.f32.mrb[0].mxu0
      %1457 = vmatprep.mubr.bf16.mxu0 %v854
      %1458 = vmatmul.mubr.bf16.gmra.mrb[0].mxu0 %v853
      %v1459 = vpop.f32.mrb[0].mxu0
      %v1460 = vadd.f32 0.0, %v1459
      %v1461 = vpop.f32.mrb[0].mxu0
      %v1462 = vpop.f32.mrb[0].mxu0
      %v1463 = vadd.f32 0.0, %v1462
      %v1464 = vpop.f32.mrb[0].mxu0
      %1465 = vmatprep.mubr.bf16.mxu0 %v858
      %1466 = vmatmul.mubr.bf16.gmra.mrb[0].mxu0 %v857
      %v1467 = vpop.f32.mrb[0].mxu0
      %v1468 = vadd.f32 0.0, %v1467
      %v1469 = vpop.f32.mrb[0].mxu0
      %v1470 = vpop.f32.mrb[0].mxu0
      %v1471 = vadd.f32 0.0, %v1470
      %v1472 = vpop.f32.mrb[0].mxu0
      %1473 = vmatprep.mubr.bf16.mxu0 %v862
      %1474 = vmatmul.mubr.bf16.gmra.mrb[0].mxu0 %v861
      %v1475 = vpop.f32.mrb[0].mxu0
      %v1476 = vadd.f32 0.0, %v1475
      %v1477 = vpop.f32.mrb[0].mxu0
      %v1478 = vpop.f32.mrb[0].mxu0
      %v1479 = vadd.f32 0.0, %v1478
      %v1480 = vpop.f32.mrb[0].mxu0
      %1481 = vmatprep.mubr.bf16.mxu0 %v866
      %1482 = vmatmul.mubr.bf16.gmra.mrb[0].mxu0 %v865
      %v1483 = vpop.f32.mrb[0].mxu0
      %v1484 = vadd.f32 0.0, %v1483
      %v1485 = vpop.f32.mrb[0].mxu0
      %v1486 = vpop.f32.mrb[0].mxu0
      %v1487 = vadd.f32 0.0, %v1486
      %v1488 = vpop.f32.mrb[0].mxu0
      %1489 = vdwg.mxu0
      %1490 = vmatprep.subr.bf16.mxu0 0
      %1491 = vmatpush1.bf16.msra.mxu0 %v1145
      %1492 = vmatprep.subr.bf16.mxu0 0
      %1493 = vmatpush1.bf16.msra.mxu0 %v1146
      %1494 = vmatprep.subr.bf16.mxu0 0
      %1495 = vmatpush1.bf16.msra.mxu0 %v1147
      %1496 = vmatprep.subr.bf16.mxu0 0
      %1497 = vmatpush1.bf16.msra.mxu0 %v1148
      %1498 = vmatprep.subr.bf16.mxu0 0
      %1499 = vmatpush1.bf16.msra.mxu0 %v1149
      %1500 = vmatprep.subr.bf16.mxu0 0
      %1501 = vmatpush1.bf16.msra.mxu0 %v1150
      %1502 = vmatprep.subr.bf16.mxu0 0
      %1503 = vmatpush1.bf16.msra.mxu0 %v1151
      %1504 = vmatprep.subr.bf16.mxu0 0
      %1505 = vmatpush1.bf16.msra.mxu0 %v1152
      %1506 = vmatprep.subr.bf16.mxu0 0
      %1507 = vmatpush1.bf16.msra.mxu0 %v1153
      %1508 = vmatprep.subr.bf16.mxu0 0
      %1509 = vmatpush1.bf16.msra.mxu0 %v1154
      %1510 = vmatprep.subr.bf16.mxu0 0
      %1511 = vmatpush1.bf16.msra.mxu0 %v1155
      %1512 = vmatprep.subr.bf16.mxu0 0
      %1513 = vmatpush1.bf16.msra.mxu0 %v1156
      %1514 = vmatprep.subr.bf16.mxu0 0
      %1515 = vmatpush1.bf16.msra.mxu0 %v1157
      %1516 = vmatprep.subr.bf16.mxu0 0
      %1517 = vmatpush1.bf16.msra.mxu0 %v1158
      %1518 = vmatprep.subr.bf16.mxu0 0
      %1519 = vmatpush1.bf16.msra.mxu0 %v1159
      %1520 = vmatprep.subr.bf16.mxu0 0
      %1521 = vmatpush1.bf16.msra.mxu0 %v1160
      %1522 = vmatprep.mubr.bf16.mxu0 %v740
      %1523 = vmatmul.mubr.bf16.gmra.mrb[0].mxu0 %v739
      %v1524 = vpop.f32.mrb[0].mxu0
      %v1525 = vadd.f32 %v1228, %v1524
      %v1526 = vpop.f32.mrb[0].mxu0
      %v1527 = vpop.f32.mrb[0].mxu0
      %v1528 = vadd.f32 %v1231, %v1527
      %v1529 = vpop.f32.mrb[0].mxu0
      %1530 = vmatprep.mubr.bf16.mxu0 %v744
      %1531 = vmatmul.mubr.bf16.gmra.mrb[0].mxu0 %v743
      %v1532 = vpop.f32.mrb[0].mxu0
      %v1533 = vadd.f32 %v1236, %v1532
      %v1534 = vpop.f32.mrb[0].mxu0
      %v1535 = vpop.f32.mrb[0].mxu0
      %v1536 = vadd.f32 %v1239, %v1535
      %v1537 = vpop.f32.mrb[0].mxu0
      %1538 = vmatprep.mubr.bf16.mxu0 %v748
      %1539 = vmatmul.mubr.bf16.gmra.mrb[0].mxu0 %v747
      %v1540 = vpop.f32.mrb[0].mxu0
      %v1541 = vadd.f32 %v1244, %v1540
      %v1542 = vpop.f32.mrb[0].mxu0
      %v1543 = vpop.f32.mrb[0].mxu0
      %v1544 = vadd.f32 %v1247, %v1543
      %v1545 = vpop.f32.mrb[0].mxu0
      %1546 = vmatprep.mubr.bf16.mxu0 %v752
      %1547 = vmatmul.mubr.bf16.gmra.mrb[0].mxu0 %v751
      %v1548 = vpop.f32.mrb[0].mxu0
      %v1549 = vadd.f32 %v1252, %v1548
      %v1550 = vpop.f32.mrb[0].mxu0
      %v1551 = vpop.f32.mrb[0].mxu0
      %v1552 = vadd.f32 %v1255, %v1551
      %v1553 = vpop.f32.mrb[0].mxu0
      %1554 = vmatprep.mubr.bf16.mxu0 %v756
      %1555 = vmatmul.mubr.bf16.gmra.mrb[0].mxu0 %v755
      %v1556 = vpop.f32.mrb[0].mxu0
      %v1557 = vadd.f32 %v1260, %v1556
      %v1558 = vpop.f32.mrb[0].mxu0
      %v1559 = vpop.f32.mrb[0].mxu0
      %v1560 = vadd.f32 %v1263, %v1559
      %v1561 = vpop.f32.mrb[0].mxu0
      %1562 = vmatprep.mubr.bf16.mxu0 %v760
      %1563 = vmatmul.mubr.bf16.gmra.mrb[0].mxu0 %v759
      %v1564 = vpop.f32.mrb[0].mxu0
      %v1565 = vadd.f32 %v1268, %v1564
      %v1566 = vpop.f32.mrb[0].mxu0
      %v1567 = vpop.f32.mrb[0].mxu0
      %v1568 = vadd.f32 %v1271, %v1567
      %v1569 = vpop.f32.mrb[0].mxu0
      %1570 = vmatprep.mubr.bf16.mxu0 %v764
      %1571 = vmatmul.mubr.bf16.gmra.mrb[0].mxu0 %v763
      %v1572 = vpop.f32.mrb[0].mxu0
      %v1573 = vadd.f32 %v1276, %v1572
      %v1574 = vpop.f32.mrb[0].mxu0
      %v1575 = vpop.f32.mrb[0].mxu0
      %v1576 = vadd.f32 %v1279, %v1575
      %v1577 = vpop.f32.mrb[0].mxu0
      %1578 = vmatprep.mubr.bf16.mxu0 %v768
      %1579 = vmatmul.mubr.bf16.gmra.mrb[0].mxu0 %v767
      %v1580 = vpop.f32.mrb[0].mxu0
      %v1581 = vadd.f32 %v1284, %v1580
      %v1582 = vpop.f32.mrb[0].mxu0
      %v1583 = vpop.f32.mrb[0].mxu0
      %v1584 = vadd.f32 %v1287, %v1583
      %v1585 = vpop.f32.mrb[0].mxu0
      %1586 = vmatprep.mubr.bf16.mxu0 %v772
      %1587 = vmatmul.mubr.bf16.gmra.mrb[0].mxu0 %v771
      %v1588 = vpop.f32.mrb[0].mxu0
      %v1589 = vadd.f32 %v1292, %v1588
      %v1590 = vpop.f32.mrb[0].mxu0
      %v1591 = vpop.f32.mrb[0].mxu0
      %v1592 = vadd.f32 %v1295, %v1591
      %v1593 = vpop.f32.mrb[0].mxu0
      %1594 = vmatprep.mubr.bf16.mxu0 %v776
      %1595 = vmatmul.mubr.bf16.gmra.mrb[0].mxu0 %v775
      %v1596 = vpop.f32.mrb[0].mxu0
      %v1597 = vadd.f32 %v1300, %v1596
      %v1598 = vpop.f32.mrb[0].mxu0
      %v1599 = vpop.f32.mrb[0].mxu0
      %v1600 = vadd.f32 %v1303, %v1599
      %v1601 = vpop.f32.mrb[0].mxu0
      %1602 = vmatprep.mubr.bf16.mxu0 %v780
      %1603 = vmatmul.mubr.bf16.gmra.mrb[0].mxu0 %v779
      %v1604 = vpop.f32.mrb[0].mxu0
      %v1605 = vadd.f32 %v1308, %v1604
      %v1606 = vpop.f32.mrb[0].mxu0
      %v1607 = vpop.f32.mrb[0].mxu0
      %v1608 = vadd.f32 %v1311, %v1607
      %v1609 = vpop.f32.mrb[0].mxu0
      %1610 = vmatprep.mubr.bf16.mxu0 %v784
      %1611 = vmatmul.mubr.bf16.gmra.mrb[0].mxu0 %v783
      %v1612 = vpop.f32.mrb[0].mxu0
      %v1613 = vadd.f32 %v1316, %v1612
      %v1614 = vpop.f32.mrb[0].mxu0
      %v1615 = vpop.f32.mrb[0].mxu0
      %v1616 = vadd.f32 %v1319, %v1615
      %v1617 = vpop.f32.mrb[0].mxu0
      %1618 = vmatprep.mubr.bf16.mxu0 %v788
      %1619 = vmatmul.mubr.bf16.gmra.mrb[0].mxu0 %v787
      %v1620 = vpop.f32.mrb[0].mxu0
      %v1621 = vadd.f32 %v1324, %v1620
      %v1622 = vpop.f32.mrb[0].mxu0
      %v1623 = vpop.f32.mrb[0].mxu0
      %v1624 = vadd.f32 %v1327, %v1623
      %v1625 = vpop.f32.mrb[0].mxu0
      %1626 = vmatprep.mubr.bf16.mxu0 %v792
      %1627 = vmatmul.mubr.bf16.gmra.mrb[0].mxu0 %v791
      %v1628 = vpop.f32.mrb[0].mxu0
      %v1629 = vadd.f32 %v1332, %v1628
      %v1630 = vpop.f32.mrb[0].mxu0
      %v1631 = vpop.f32.mrb[0].mxu0
      %v1632 = vadd.f32 %v1335, %v1631
      %v1633 = vpop.f32.mrb[0].mxu0
      %1634 = vmatprep.mubr.bf16.mxu0 %v796
      %1635 = vmatmul.mubr.bf16.gmra.mrb[0].mxu0 %v795
      %v1636 = vpop.f32.mrb[0].mxu0
      %v1637 = vadd.f32 %v1340, %v1636
      %v1638 = vpop.f32.mrb[0].mxu0
      %v1639 = vpop.f32.mrb[0].mxu0
      %v1640 = vadd.f32 %v1343, %v1639
      %v1641 = vpop.f32.mrb[0].mxu0
      %1642 = vmatprep.mubr.bf16.mxu0 %v800
      %1643 = vmatmul.mubr.bf16.gmra.mrb[0].mxu0 %v799
      %v1644 = vpop.f32.mrb[0].mxu0
      %v1645 = vadd.f32 %v1348, %v1644
      %v1646 = vpop.f32.mrb[0].mxu0
      %v1647 = vpop.f32.mrb[0].mxu0
      %v1648 = vadd.f32 %v1351, %v1647
      %v1649 = vpop.f32.mrb[0].mxu0
      %1650 = vmatprep.mubr.bf16.mxu0 %v804
      %1651 = vmatmul.mubr.bf16.gmra.mrb[0].mxu0 %v803
      %v1652 = vpop.f32.mrb[0].mxu0
      %v1653 = vadd.f32 %v1356, %v1652
      %v1654 = vpop.f32.mrb[0].mxu0
      %v1655 = vpop.f32.mrb[0].mxu0
      %v1656 = vadd.f32 %v1359, %v1655
      %v1657 = vpop.f32.mrb[0].mxu0
      %1658 = vmatprep.mubr.bf16.mxu0 %v808
      %1659 = vmatmul.mubr.bf16.gmra.mrb[0].mxu0 %v807
      %v1660 = vpop.f32.mrb[0].mxu0
      %v1661 = vadd.f32 %v1364, %v1660
      %v1662 = vpop.f32.mrb[0].mxu0
      %v1663 = vpop.f32.mrb[0].mxu0
      %v1664 = vadd.f32 %v1367, %v1663
      %v1665 = vpop.f32.mrb[0].mxu0
      %1666 = vmatprep.mubr.bf16.mxu0 %v812
      %1667 = vmatmul.mubr.bf16.gmra.mrb[0].mxu0 %v811
      %v1668 = vpop.f32.mrb[0].mxu0
      %v1669 = vadd.f32 %v1372, %v1668
      %v1670 = vpop.f32.mrb[0].mxu0
      %v1671 = vpop.f32.mrb[0].mxu0
      %v1672 = vadd.f32 %v1375, %v1671
      %v1673 = vpop.f32.mrb[0].mxu0
      %1674 = vmatprep.mubr.bf16.mxu0 %v816
      %1675 = vmatmul.mubr.bf16.gmra.mrb[0].mxu0 %v815
      %v1676 = vpop.f32.mrb[0].mxu0
      %v1677 = vadd.f32 %v1380, %v1676
      %v1678 = vpop.f32.mrb[0].mxu0
      %v1679 = vpop.f32.mrb[0].mxu0
      %v1680 = vadd.f32 %v1383, %v1679
      %v1681 = vpop.f32.mrb[0].mxu0
      %1682 = vmatprep.mubr.bf16.mxu0 %v820
      %1683 = vmatmul.mubr.bf16.gmra.mrb[0].mxu0 %v819
      %v1684 = vpop.f32.mrb[0].mxu0
      %v1685 = vadd.f32 %v1388, %v1684
      %v1686 = vpop.f32.mrb[0].mxu0
      %v1687 = vpop.f32.mrb[0].mxu0
      %v1688 = vadd.f32 %v1391, %v1687
      %v1689 = vpop.f32.mrb[0].mxu0
      %1690 = vmatprep.mubr.bf16.mxu0 %v824
      %1691 = vmatmul.mubr.bf16.gmra.mrb[0].mxu0 %v823
      %v1692 = vpop.f32.mrb[0].mxu0
      %v1693 = vadd.f32 %v1396, %v1692
      %v1694 = vpop.f32.mrb[0].mxu0
      %v1695 = vpop.f32.mrb[0].mxu0
      %v1696 = vadd.f32 %v1399, %v1695
      %v1697 = vpop.f32.mrb[0].mxu0
      %1698 = vmatprep.mubr.bf16.mxu0 %v828
      %1699 = vmatmul.mubr.bf16.gmra.mrb[0].mxu0 %v827
      %v1700 = vpop.f32.mrb[0].mxu0
      %v1701 = vadd.f32 %v1404, %v1700
      %v1702 = vpop.f32.mrb[0].mxu0
      %v1703 = vpop.f32.mrb[0].mxu0
      %v1704 = vadd.f32 %v1407, %v1703
      %v1705 = vpop.f32.mrb[0].mxu0
      %1706 = vmatprep.mubr.bf16.mxu0 %v832
      %1707 = vmatmul.mubr.bf16.gmra.mrb[0].mxu0 %v831
      %v1708 = vpop.f32.mrb[0].mxu0
      %v1709 = vadd.f32 %v1412, %v1708
      %v1710 = vpop.f32.mrb[0].mxu0
      %v1711 = vpop.f32.mrb[0].mxu0
      %v1712 = vadd.f32 %v1415, %v1711
      %v1713 = vpop.f32.mrb[0].mxu0
      %1714 = vmatprep.mubr.bf16.mxu0 %v836
      %1715 = vmatmul.mubr.bf16.gmra.mrb[0].mxu0 %v835
      %v1716 = vpop.f32.mrb[0].mxu0
      %v1717 = vadd.f32 %v1420, %v1716
      %v1718 = vpop.f32.mrb[0].mxu0
      %v1719 = vpop.f32.mrb[0].mxu0
      %v1720 = vadd.f32 %v1423, %v1719
      %v1721 = vpop.f32.mrb[0].mxu0
      %1722 = vmatprep.mubr.bf16.mxu0 %v840
      %1723 = vmatmul.mubr.bf16.gmra.mrb[0].mxu0 %v839
      %v1724 = vpop.f32.mrb[0].mxu0
      %v1725 = vadd.f32 %v1428, %v1724
      %v1726 = vpop.f32.mrb[0].mxu0
      %v1727 = vpop.f32.mrb[0].mxu0
      %v1728 = vadd.f32 %v1431, %v1727
      %v1729 = vpop.f32.mrb[0].mxu0
      %1730 = vmatprep.mubr.bf16.mxu0 %v844
      %1731 = vmatmul.mubr.bf16.gmra.mrb[0].mxu0 %v843
      %v1732 = vpop.f32.mrb[0].mxu0
      %v1733 = vadd.f32 %v1436, %v1732
      %v1734 = vpop.f32.mrb[0].mxu0
      %v1735 = vpop.f32.mrb[0].mxu0
      %v1736 = vadd.f32 %v1439, %v1735
      %v1737 = vpop.f32.mrb[0].mxu0
      %1738 = vmatprep.mubr.bf16.mxu0 %v848
      %1739 = vmatmul.mubr.bf16.gmra.mrb[0].mxu0 %v847
      %v1740 = vpop.f32.mrb[0].mxu0
      %v1741 = vadd.f32 %v1444, %v1740
      %v1742 = vpop.f32.mrb[0].mxu0
      %v1743 = vpop.f32.mrb[0].mxu0
      %v1744 = vadd.f32 %v1447, %v1743
      %v1745 = vpop.f32.mrb[0].mxu0
      %1746 = vmatprep.mubr.bf16.mxu0 %v852
      %1747 = vmatmul.mubr.bf16.gmra.mrb[0].mxu0 %v851
      %v1748 = vpop.f32.mrb[0].mxu0
      %v1749 = vadd.f32 %v1452, %v1748
      %v1750 = vpop.f32.mrb[0].mxu0
      %v1751 = vpop.f32.mrb[0].mxu0
      %v1752 = vadd.f32 %v1455, %v1751
      %v1753 = vpop.f32.mrb[0].mxu0
      %1754 = vmatprep.mubr.bf16.mxu0 %v856
      %1755 = vmatmul.mubr.bf16.gmra.mrb[0].mxu0 %v855
      %v1756 = vpop.f32.mrb[0].mxu0
      %v1757 = vadd.f32 %v1460, %v1756
      %v1758 = vpop.f32.mrb[0].mxu0
      %v1759 = vpop.f32.mrb[0].mxu0
      %v1760 = vadd.f32 %v1463, %v1759
      %v1761 = vpop.f32.mrb[0].mxu0
      %1762 = vmatprep.mubr.bf16.mxu0 %v860
      %1763 = vmatmul.mubr.bf16.gmra.mrb[0].mxu0 %v859
      %v1764 = vpop.f32.mrb[0].mxu0
      %v1765 = vadd.f32 %v1468, %v1764
      %v1766 = vpop.f32.mrb[0].mxu0
      %v1767 = vpop.f32.mrb[0].mxu0
      %v1768 = vadd.f32 %v1471, %v1767
      %v1769 = vpop.f32.mrb[0].mxu0
      %1770 = vmatprep.mubr.bf16.mxu0 %v864
      %1771 = vmatmul.mubr.bf16.gmra.mrb[0].mxu0 %v863
      %v1772 = vpop.f32.mrb[0].mxu0
      %v1773 = vadd.f32 %v1476, %v1772
      %v1774 = vpop.f32.mrb[0].mxu0
      %v1775 = vpop.f32.mrb[0].mxu0
      %v1776 = vadd.f32 %v1479, %v1775
      %v1777 = vpop.f32.mrb[0].mxu0
      %1778 = vmatprep.mubr.bf16.mxu0 %v868
      %1779 = vmatmul.mubr.bf16.gmra.mrb[0].mxu0 %v867
      %v1780 = vpop.f32.mrb[0].mxu0
      %v1781 = vadd.f32 %v1484, %v1780
      %v1782 = vpop.f32.mrb[0].mxu0
      %v1783 = vpop.f32.mrb[0].mxu0
      %v1784 = vadd.f32 %v1487, %v1783
      %v1785 = vpop.f32.mrb[0].mxu0
      %1786 = vdwg.mxu0
      %v1787 = vmul.f32 %v1525, %v1525
      %v1788 = vmul.f32 %v1528, %v1528
      %v1789 = vmul.f32 %v1533, %v1533
      %v1790 = vmul.f32 %v1536, %v1536
      %v1791 = vmul.f32 %v1541, %v1541
      %v1792 = vmul.f32 %v1544, %v1544
      %v1793 = vmul.f32 %v1549, %v1549
      %v1794 = vmul.f32 %v1552, %v1552
      %v1795 = vmul.f32 %v1557, %v1557
      %v1796 = vmul.f32 %v1560, %v1560
      %v1797 = vmul.f32 %v1565, %v1565
      %v1798 = vmul.f32 %v1568, %v1568
      %v1799 = vmul.f32 %v1573, %v1573
      %v1800 = vmul.f32 %v1576, %v1576
      %v1801 = vmul.f32 %v1581, %v1581
      %v1802 = vmul.f32 %v1584, %v1584
      %v1803 = vmul.f32 %v1589, %v1589
      %v1804 = vmul.f32 %v1592, %v1592
      %v1805 = vmul.f32 %v1597, %v1597
      %v1806 = vmul.f32 %v1600, %v1600
      %v1807 = vmul.f32 %v1605, %v1605
      %v1808 = vmul.f32 %v1608, %v1608
      %v1809 = vmul.f32 %v1613, %v1613
      %v1810 = vmul.f32 %v1616, %v1616
      %v1811 = vmul.f32 %v1621, %v1621
      %v1812 = vmul.f32 %v1624, %v1624
      %v1813 = vmul.f32 %v1629, %v1629
      %v1814 = vmul.f32 %v1632, %v1632
      %v1815 = vmul.f32 %v1637, %v1637
      %v1816 = vmul.f32 %v1640, %v1640
      %v1817 = vmul.f32 %v1645, %v1645
      %v1818 = vmul.f32 %v1648, %v1648
      %v1819 = vmul.f32 %v1653, %v1653
      %v1820 = vmul.f32 %v1656, %v1656
      %v1821 = vmul.f32 %v1661, %v1661
      %v1822 = vmul.f32 %v1664, %v1664
      %v1823 = vmul.f32 %v1669, %v1669
      %v1824 = vmul.f32 %v1672, %v1672
      %v1825 = vmul.f32 %v1677, %v1677
      %v1826 = vmul.f32 %v1680, %v1680
      %v1827 = vmul.f32 %v1685, %v1685
      %v1828 = vmul.f32 %v1688, %v1688
      %v1829 = vmul.f32 %v1693, %v1693
      %v1830 = vmul.f32 %v1696, %v1696
      %v1831 = vmul.f32 %v1701, %v1701
      %v1832 = vmul.f32 %v1704, %v1704
      %v1833 = vmul.f32 %v1709, %v1709
      %v1834 = vmul.f32 %v1712, %v1712
      %v1835 = vmul.f32 %v1717, %v1717
      %v1836 = vmul.f32 %v1720, %v1720
      %v1837 = vmul.f32 %v1725, %v1725
      %v1838 = vmul.f32 %v1728, %v1728
      %v1839 = vmul.f32 %v1733, %v1733
      %v1840 = vmul.f32 %v1736, %v1736
      %v1841 = vmul.f32 %v1741, %v1741
      %v1842 = vmul.f32 %v1744, %v1744
      %v1843 = vmul.f32 %v1749, %v1749
      %v1844 = vmul.f32 %v1752, %v1752
      %v1845 = vmul.f32 %v1757, %v1757
      %v1846 = vmul.f32 %v1760, %v1760
      %v1847 = vmul.f32 %v1765, %v1765
      %v1848 = vmul.f32 %v1768, %v1768
      %v1849 = vmul.f32 %v1773, %v1773
      %v1850 = vmul.f32 %v1776, %v1776
      %v1851 = vmul.f32 %v1781, %v1781
      %v1852 = vmul.f32 %v1784, %v1784
      %v1853 = vadd.f32 %v1787, %v1820
      %v1854 = vadd.f32 %v1788, %v1821
      %v1855 = vadd.f32 %v1789, %v1822
      %v1856 = vadd.f32 %v1790, %v1823
      %v1857 = vadd.f32 %v1791, %v1824
      %v1858 = vadd.f32 %v1792, %v1825
      %v1859 = vadd.f32 %v1793, %v1826
      %v1860 = vadd.f32 %v1794, %v1827
      %v1861 = vadd.f32 %v1795, %v1828
      %v1862 = vadd.f32 %v1796, %v1829
      %v1863 = vadd.f32 %v1797, %v1830
      %v1864 = vadd.f32 %v1798, %v1831
      %v1865 = vadd.f32 %v1799, %v1832
      %v1866 = vadd.f32 %v1800, %v1833
      %v1867 = vadd.f32 %v1801, %v1834
      %v1868 = vadd.f32 %v1802, %v1835
      %v1869 = vadd.f32 %v1803, %v1836
      %v1870 = vadd.f32 %v1804, %v1837
      %v1871 = vadd.f32 %v1805, %v1838
      %v1872 = vadd.f32 %v1806, %v1839
      %v1873 = vadd.f32 %v1807, %v1840
      %v1874 = vadd.f32 %v1808, %v1841
      %v1875 = vadd.f32 %v1809, %v1842
      %v1876 = vadd.f32 %v1810, %v1843
      %v1877 = vadd.f32 %v1811, %v1844
      %v1878 = vadd.f32 %v1812, %v1845
      %v1879 = vadd.f32 %v1813, %v1846
      %v1880 = vadd.f32 %v1814, %v1847
      %v1881 = vadd.f32 %v1815, %v1848
      %v1882 = vadd.f32 %v1816, %v1849
      %v1883 = vadd.f32 %v1817, %v1850
      %v1884 = vadd.f32 %v1818, %v1851
      %v1885 = vadd.f32 %v1819, %v1852
      %v1886 = vadd.f32 %v1853, 1e-18
      %v1887 = vadd.f32 %v1854, 1e-18
      %v1888 = vadd.f32 %v1855, 1e-18
      %v1889 = vadd.f32 %v1856, 1e-18
      %v1890 = vadd.f32 %v1857, 1e-18
      %v1891 = vadd.f32 %v1858, 1e-18
      %v1892 = vadd.f32 %v1859, 1e-18
      %v1893 = vadd.f32 %v1860, 1e-18
      %v1894 = vadd.f32 %v1861, 1e-18
      %v1895 = vadd.f32 %v1862, 1e-18
      %v1896 = vadd.f32 %v1863, 1e-18
      %v1897 = vadd.f32 %v1864, 1e-18
      %v1898 = vadd.f32 %v1865, 1e-18
      %v1899 = vadd.f32 %v1866, 1e-18
      %v1900 = vadd.f32 %v1867, 1e-18
      %v1901 = vadd.f32 %v1868, 1e-18
      %v1902 = vadd.f32 %v1869, 1e-18
      %v1903 = vadd.f32 %v1870, 1e-18
      %v1904 = vadd.f32 %v1871, 1e-18
      %v1905 = vadd.f32 %v1872, 1e-18
      %v1906 = vadd.f32 %v1873, 1e-18
      %v1907 = vadd.f32 %v1874, 1e-18
      %v1908 = vadd.f32 %v1875, 1e-18
      %v1909 = vadd.f32 %v1876, 1e-18
      %v1910 = vadd.f32 %v1877, 1e-18
      %v1911 = vadd.f32 %v1878, 1e-18
      %v1912 = vadd.f32 %v1879, 1e-18
      %v1913 = vadd.f32 %v1880, 1e-18
      %v1914 = vadd.f32 %v1881, 1e-18
      %v1915 = vadd.f32 %v1882, 1e-18
      %v1916 = vadd.f32 %v1883, 1e-18
      %v1917 = vadd.f32 %v1884, 1e-18
      %v1918 = vadd.f32 %v1885, 1e-18
      %v1919 = vlog2.pop %v1886
      %v1920 = vmul.f32 %v1919, 0.6931472
      %v1921 = vlog2.pop %v1887
      %v1922 = vmul.f32 %v1921, 0.6931472
      %v1923 = vlog2.pop %v1888
      %v1924 = vmul.f32 %v1923, 0.6931472
      %v1925 = vlog2.pop %v1889
      %v1926 = vmul.f32 %v1925, 0.6931472
      %v1927 = vlog2.pop %v1890
      %v1928 = vmul.f32 %v1927, 0.6931472
      %v1929 = vlog2.pop %v1891
      %v1930 = vmul.f32 %v1929, 0.6931472
      %v1931 = vlog2.pop %v1892
      %v1932 = vmul.f32 %v1931, 0.6931472
      %v1933 = vlog2.pop %v1893
      %v1934 = vmul.f32 %v1933, 0.6931472
      %v1935 = vlog2.pop %v1894
      %v1936 = vmul.f32 %v1935, 0.6931472
      %v1937 = vlog2.pop %v1895
      %v1938 = vmul.f32 %v1937, 0.6931472
      %v1939 = vlog2.pop %v1896
      %v1940 = vmul.f32 %v1939, 0.6931472
      %v1941 = vlog2.pop %v1897
      %v1942 = vmul.f32 %v1941, 0.6931472
      %v1943 = vlog2.pop %v1898
      %v1944 = vmul.f32 %v1943, 0.6931472
      %v1945 = vlog2.pop %v1899
      %v1946 = vmul.f32 %v1945, 0.6931472
      %v1947 = vlog2.pop %v1900
      %v1948 = vmul.f32 %v1947, 0.6931472
      %v1949 = vlog2.pop %v1901
      %v1950 = vmul.f32 %v1949, 0.6931472
      %v1951 = vlog2.pop %v1902
      %v1952 = vmul.f32 %v1951, 0.6931472
      %v1953 = vlog2.pop %v1903
      %v1954 = vmul.f32 %v1953, 0.6931472
      %v1955 = vlog2.pop %v1904
      %v1956 = vmul.f32 %v1955, 0.6931472
      %v1957 = vlog2.pop %v1905
      %v1958 = vmul.f32 %v1957, 0.6931472
      %v1959 = vlog2.pop %v1906
      %v1960 = vmul.f32 %v1959, 0.6931472
      %v1961 = vlog2.pop %v1907
      %v1962 = vmul.f32 %v1961, 0.6931472
      %v1963 = vlog2.pop %v1908
      %v1964 = vmul.f32 %v1963, 0.6931472
      %v1965 = vlog2.pop %v1909
      %v1966 = vmul.f32 %v1965, 0.6931472
      %v1967 = vlog2.pop %v1910
      %v1968 = vmul.f32 %v1967, 0.6931472
      %v1969 = vlog2.pop %v1911
      %v1970 = vmul.f32 %v1969, 0.6931472
      %v1971 = vlog2.pop %v1912
      %v1972 = vmul.f32 %v1971, 0.6931472
      %v1973 = vlog2.pop %v1913
      %v1974 = vmul.f32 %v1973, 0.6931472
      %v1975 = vlog2.pop %v1914
      %v1976 = vmul.f32 %v1975, 0.6931472
      %v1977 = vlog2.pop %v1915
      %v1978 = vmul.f32 %v1977, 0.6931472
      %v1979 = vlog2.pop %v1916
      %v1980 = vmul.f32 %v1979, 0.6931472
      %v1981 = vlog2.pop %v1917
      %v1982 = vmul.f32 %v1981, 0.6931472
      %v1983 = vlog2.pop %v1918
      %v1984 = vmul.f32 %v1983, 0.6931472
      %v1985 = vmul.f32 %v1920, 0.5
      %v1986 = vmul.f32 %v1922, 0.5
      %v1987 = vmul.f32 %v1924, 0.5
      %v1988 = vmul.f32 %v1926, 0.5
      %v1989 = vmul.f32 %v1928, 0.5
      %v1990 = vmul.f32 %v1930, 0.5
      %v1991 = vmul.f32 %v1932, 0.5
      %v1992 = vmul.f32 %v1934, 0.5
      %v1993 = vmul.f32 %v1936, 0.5
      %v1994 = vmul.f32 %v1938, 0.5
      %v1995 = vmul.f32 %v1940, 0.5
      %v1996 = vmul.f32 %v1942, 0.5
      %v1997 = vmul.f32 %v1944, 0.5
      %v1998 = vmul.f32 %v1946, 0.5
      %v1999 = vmul.f32 %v1948, 0.5
      %v2000 = vmul.f32 %v1950, 0.5
      %v2001 = vmul.f32 %v1952, 0.5
      %v2002 = vmul.f32 %v1954, 0.5
      %v2003 = vmul.f32 %v1956, 0.5
      %v2004 = vmul.f32 %v1958, 0.5
      %v2005 = vmul.f32 %v1960, 0.5
      %v2006 = vmul.f32 %v1962, 0.5
      %v2007 = vmul.f32 %v1964, 0.5
      %v2008 = vmul.f32 %v1966, 0.5
      %v2009 = vmul.f32 %v1968, 0.5
      %v2010 = vmul.f32 %v1970, 0.5
      %v2011 = vmul.f32 %v1972, 0.5
      %v2012 = vmul.f32 %v1974, 0.5
      %v2013 = vmul.f32 %v1976, 0.5
      %v2014 = vmul.f32 %v1978, 0.5
      %v2015 = vmul.f32 %v1980, 0.5
      %v2016 = vmul.f32 %v1982, 0.5
      %v2017 = vmul.f32 %v1984, 0.5
      %vm2018 = vcmask 89088
      %v2019 = vsel %vm2018, %v1985, 0.0
      %2020 = vadd.xlane.f32.xlu0 %v2019
      %v2021 = vpop.xlane.xlu0 %2020
      %v2022 = vsel %vm2018, %v1986, 0.0
      %2023 = vadd.xlane.f32.xlu0 %v2022
      %v2024 = vpop.xlane.xlu0 %2023
      %v2025 = vsel %vm2018, %v1987, 0.0
      %2026 = vadd.xlane.f32.xlu0 %v2025
      %v2027 = vpop.xlane.xlu0 %2026
      %v2028 = vsel %vm2018, %v1988, 0.0
      %2029 = vadd.xlane.f32.xlu0 %v2028
      %v2030 = vpop.xlane.xlu0 %2029
      %v2031 = vsel %vm2018, %v1989, 0.0
      %2032 = vadd.xlane.f32.xlu0 %v2031
      %v2033 = vpop.xlane.xlu0 %2032
      %v2034 = vsel %vm2018, %v1990, 0.0
      %2035 = vadd.xlane.f32.xlu0 %v2034
      %v2036 = vpop.xlane.xlu0 %2035
      %v2037 = vsel %vm2018, %v1991, 0.0
      %2038 = vadd.xlane.f32.xlu0 %v2037
      %v2039 = vpop.xlane.xlu0 %2038
      %v2040 = vsel %vm2018, %v1992, 0.0
      %2041 = vadd.xlane.f32.xlu0 %v2040
      %v2042 = vpop.xlane.xlu0 %2041
      %v2043 = vsel %vm2018, %v1993, 0.0
      %2044 = vadd.xlane.f32.xlu0 %v2043
      %v2045 = vpop.xlane.xlu0 %2044
      %v2046 = vsel %vm2018, %v1994, 0.0
      %2047 = vadd.xlane.f32.xlu0 %v2046
      %v2048 = vpop.xlane.xlu0 %2047
      %v2049 = vsel %vm2018, %v1995, 0.0
      %2050 = vadd.xlane.f32.xlu0 %v2049
      %v2051 = vpop.xlane.xlu0 %2050
      %v2052 = vsel %vm2018, %v1996, 0.0
      %2053 = vadd.xlane.f32.xlu0 %v2052
      %v2054 = vpop.xlane.xlu0 %2053
      %v2055 = vsel %vm2018, %v1997, 0.0
      %2056 = vadd.xlane.f32.xlu0 %v2055
      %v2057 = vpop.xlane.xlu0 %2056
      %v2058 = vsel %vm2018, %v1998, 0.0
      %2059 = vadd.xlane.f32.xlu0 %v2058
      %v2060 = vpop.xlane.xlu0 %2059
      %v2061 = vsel %vm2018, %v1999, 0.0
      %2062 = vadd.xlane.f32.xlu0 %v2061
      %v2063 = vpop.xlane.xlu0 %2062
      %v2064 = vsel %vm2018, %v2000, 0.0
      %2065 = vadd.xlane.f32.xlu0 %v2064
      %v2066 = vpop.xlane.xlu0 %2065
      %v2067 = vsel %vm2018, %v2001, 0.0
      %2068 = vadd.xlane.f32.xlu0 %v2067
      %v2069 = vpop.xlane.xlu0 %2068
      %v2070 = vsel %vm2018, %v2002, 0.0
      %2071 = vadd.xlane.f32.xlu0 %v2070
      %v2072 = vpop.xlane.xlu0 %2071
      %v2073 = vsel %vm2018, %v2003, 0.0
      %2074 = vadd.xlane.f32.xlu0 %v2073
      %v2075 = vpop.xlane.xlu0 %2074
      %v2076 = vsel %vm2018, %v2004, 0.0
      %2077 = vadd.xlane.f32.xlu0 %v2076
      %v2078 = vpop.xlane.xlu0 %2077
      %v2079 = vsel %vm2018, %v2005, 0.0
      %2080 = vadd.xlane.f32.xlu0 %v2079
      %v2081 = vpop.xlane.xlu0 %2080
      %v2082 = vsel %vm2018, %v2006, 0.0
      %2083 = vadd.xlane.f32.xlu0 %v2082
      %v2084 = vpop.xlane.xlu0 %2083
      %v2085 = vsel %vm2018, %v2007, 0.0
      %2086 = vadd.xlane.f32.xlu0 %v2085
      %v2087 = vpop.xlane.xlu0 %2086
      %v2088 = vsel %vm2018, %v2008, 0.0
      %2089 = vadd.xlane.f32.xlu0 %v2088
      %v2090 = vpop.xlane.xlu0 %2089
      %v2091 = vsel %vm2018, %v2009, 0.0
      %2092 = vadd.xlane.f32.xlu0 %v2091
      %v2093 = vpop.xlane.xlu0 %2092
      %v2094 = vsel %vm2018, %v2010, 0.0
      %2095 = vadd.xlane.f32.xlu0 %v2094
      %v2096 = vpop.xlane.xlu0 %2095
      %v2097 = vsel %vm2018, %v2011, 0.0
      %2098 = vadd.xlane.f32.xlu0 %v2097
      %v2099 = vpop.xlane.xlu0 %2098
      %v2100 = vsel %vm2018, %v2012, 0.0
      %2101 = vadd.xlane.f32.xlu0 %v2100
      %v2102 = vpop.xlane.xlu0 %2101
      %v2103 = vsel %vm2018, %v2013, 0.0
      %2104 = vadd.xlane.f32.xlu0 %v2103
      %v2105 = vpop.xlane.xlu0 %2104
      %v2106 = vsel %vm2018, %v2014, 0.0
      %2107 = vadd.xlane.f32.xlu0 %v2106
      %v2108 = vpop.xlane.xlu0 %2107
      %v2109 = vsel %vm2018, %v2015, 0.0
      %2110 = vadd.xlane.f32.xlu0 %v2109
      %v2111 = vpop.xlane.xlu0 %2110
      %v2112 = vsel %vm2018, %v2016, 0.0
      %2113 = vadd.xlane.f32.xlu0 %v2112
      %v2114 = vpop.xlane.xlu0 %2113
      %v2115 = vsel %vm2018, %v2017, 0.0
      %2116 = vadd.xlane.f32.xlu0 %v2115
      %v2117 = vpop.xlane.xlu0 %2116
      %v2118 = vrcp.pop 11.0
      %v2119 = vmul.f32 %v2021, %v2118
      %v2120 = vmul.f32 %v2024, %v2118
      %v2121 = vmul.f32 %v2027, %v2118
      %v2122 = vmul.f32 %v2030, %v2118
      %v2123 = vmul.f32 %v2033, %v2118
      %v2124 = vmul.f32 %v2036, %v2118
      %v2125 = vmul.f32 %v2039, %v2118
      %v2126 = vmul.f32 %v2042, %v2118
      %v2127 = vmul.f32 %v2045, %v2118
      %v2128 = vmul.f32 %v2048, %v2118
      %v2129 = vmul.f32 %v2051, %v2118
      %v2130 = vmul.f32 %v2054, %v2118
      %v2131 = vmul.f32 %v2057, %v2118
      %v2132 = vmul.f32 %v2060, %v2118
      %v2133 = vmul.f32 %v2063, %v2118
      %v2134 = vmul.f32 %v2066, %v2118
      %v2135 = vmul.f32 %v2069, %v2118
      %v2136 = vmul.f32 %v2072, %v2118
      %v2137 = vmul.f32 %v2075, %v2118
      %v2138 = vmul.f32 %v2078, %v2118
      %v2139 = vmul.f32 %v2081, %v2118
      %v2140 = vmul.f32 %v2084, %v2118
      %v2141 = vmul.f32 %v2087, %v2118
      %v2142 = vmul.f32 %v2090, %v2118
      %v2143 = vmul.f32 %v2093, %v2118
      %v2144 = vmul.f32 %v2096, %v2118
      %v2145 = vmul.f32 %v2099, %v2118
      %v2146 = vmul.f32 %v2102, %v2118
      %v2147 = vmul.f32 %v2105, %v2118
      %v2148 = vmul.f32 %v2108, %v2118
      %v2149 = vmul.f32 %v2111, %v2118
      %v2150 = vmul.f32 %v2114, %v2118
      %v2151 = vmul.f32 %v2117, %v2118
      %v2152 = vsub.f32 %v1985, %v2119
      %v2153 = vsub.f32 %v1986, %v2120
      %v2154 = vsub.f32 %v1987, %v2121
      %v2155 = vsub.f32 %v1988, %v2122
      %v2156 = vsub.f32 %v1989, %v2123
      %v2157 = vsub.f32 %v1990, %v2124
      %v2158 = vsub.f32 %v1991, %v2125
      %v2159 = vsub.f32 %v1992, %v2126
      %v2160 = vsub.f32 %v1993, %v2127
      %v2161 = vsub.f32 %v1994, %v2128
      %v2162 = vsub.f32 %v1995, %v2129
      %v2163 = vsub.f32 %v1996, %v2130
      %v2164 = vsub.f32 %v1997, %v2131
      %v2165 = vsub.f32 %v1998, %v2132
      %v2166 = vsub.f32 %v1999, %v2133
      %v2167 = vsub.f32 %v2000, %v2134
      %v2168 = vsub.f32 %v2001, %v2135
      %v2169 = vsub.f32 %v2002, %v2136
      %v2170 = vsub.f32 %v2003, %v2137
      %v2171 = vsub.f32 %v2004, %v2138
      %v2172 = vsub.f32 %v2005, %v2139
      %v2173 = vsub.f32 %v2006, %v2140
      %v2174 = vsub.f32 %v2007, %v2141
      %v2175 = vsub.f32 %v2008, %v2142
      %v2176 = vsub.f32 %v2009, %v2143
      %v2177 = vsub.f32 %v2010, %v2144
      %v2178 = vsub.f32 %v2011, %v2145
      %v2179 = vsub.f32 %v2012, %v2146
      %v2180 = vsub.f32 %v2013, %v2147
      %v2181 = vsub.f32 %v2014, %v2148
      %v2182 = vsub.f32 %v2015, %v2149
      %v2183 = vsub.f32 %v2016, %v2150
      %v2184 = vsub.f32 %v2017, %v2151
      %v2185 = vmul.f32 %v2152, %v2152
      %v2186 = vmul.f32 %v2153, %v2153
      %v2187 = vmul.f32 %v2154, %v2154
      %v2188 = vmul.f32 %v2155, %v2155
      %v2189 = vmul.f32 %v2156, %v2156
      %v2190 = vmul.f32 %v2157, %v2157
      %v2191 = vmul.f32 %v2158, %v2158
      %v2192 = vmul.f32 %v2159, %v2159
      %v2193 = vmul.f32 %v2160, %v2160
      %v2194 = vmul.f32 %v2161, %v2161
      %v2195 = vmul.f32 %v2162, %v2162
      %v2196 = vmul.f32 %v2163, %v2163
      %v2197 = vmul.f32 %v2164, %v2164
      %v2198 = vmul.f32 %v2165, %v2165
      %v2199 = vmul.f32 %v2166, %v2166
      %v2200 = vmul.f32 %v2167, %v2167
      %v2201 = vmul.f32 %v2168, %v2168
      %v2202 = vmul.f32 %v2169, %v2169
      %v2203 = vmul.f32 %v2170, %v2170
      %v2204 = vmul.f32 %v2171, %v2171
      %v2205 = vmul.f32 %v2172, %v2172
      %v2206 = vmul.f32 %v2173, %v2173
      %v2207 = vmul.f32 %v2174, %v2174
      %v2208 = vmul.f32 %v2175, %v2175
      %v2209 = vmul.f32 %v2176, %v2176
      %v2210 = vmul.f32 %v2177, %v2177
      %v2211 = vmul.f32 %v2178, %v2178
      %v2212 = vmul.f32 %v2179, %v2179
      %v2213 = vmul.f32 %v2180, %v2180
      %v2214 = vmul.f32 %v2181, %v2181
      %v2215 = vmul.f32 %v2182, %v2182
      %v2216 = vmul.f32 %v2183, %v2183
      %v2217 = vmul.f32 %v2184, %v2184
      %v2218 = vsel %vm2018, %v2185, 0.0
      %2219 = vadd.xlane.f32.xlu0 %v2218
      %v2220 = vpop.xlane.xlu0 %2219
      %v2221 = vsel %vm2018, %v2186, 0.0
      %2222 = vadd.xlane.f32.xlu0 %v2221
      %v2223 = vpop.xlane.xlu0 %2222
      %v2224 = vsel %vm2018, %v2187, 0.0
      %2225 = vadd.xlane.f32.xlu0 %v2224
      %v2226 = vpop.xlane.xlu0 %2225
      %v2227 = vsel %vm2018, %v2188, 0.0
      %2228 = vadd.xlane.f32.xlu0 %v2227
      %v2229 = vpop.xlane.xlu0 %2228
      %v2230 = vsel %vm2018, %v2189, 0.0
      %2231 = vadd.xlane.f32.xlu0 %v2230
      %v2232 = vpop.xlane.xlu0 %2231
      %v2233 = vsel %vm2018, %v2190, 0.0
      %2234 = vadd.xlane.f32.xlu0 %v2233
      %v2235 = vpop.xlane.xlu0 %2234
      %v2236 = vsel %vm2018, %v2191, 0.0
      %2237 = vadd.xlane.f32.xlu0 %v2236
      %v2238 = vpop.xlane.xlu0 %2237
      %v2239 = vsel %vm2018, %v2192, 0.0
      %2240 = vadd.xlane.f32.xlu0 %v2239
      %v2241 = vpop.xlane.xlu0 %2240
      %v2242 = vsel %vm2018, %v2193, 0.0
      %2243 = vadd.xlane.f32.xlu0 %v2242
      %v2244 = vpop.xlane.xlu0 %2243
      %v2245 = vsel %vm2018, %v2194, 0.0
      %2246 = vadd.xlane.f32.xlu0 %v2245
      %v2247 = vpop.xlane.xlu0 %2246
      %v2248 = vsel %vm2018, %v2195, 0.0
      %2249 = vadd.xlane.f32.xlu0 %v2248
      %v2250 = vpop.xlane.xlu0 %2249
      %v2251 = vsel %vm2018, %v2196, 0.0
      %2252 = vadd.xlane.f32.xlu0 %v2251
      %v2253 = vpop.xlane.xlu0 %2252
      %v2254 = vsel %vm2018, %v2197, 0.0
      %2255 = vadd.xlane.f32.xlu0 %v2254
      %v2256 = vpop.xlane.xlu0 %2255
      %v2257 = vsel %vm2018, %v2198, 0.0
      %2258 = vadd.xlane.f32.xlu0 %v2257
      %v2259 = vpop.xlane.xlu0 %2258
      %v2260 = vsel %vm2018, %v2199, 0.0
      %2261 = vadd.xlane.f32.xlu0 %v2260
      %v2262 = vpop.xlane.xlu0 %2261
      %v2263 = vsel %vm2018, %v2200, 0.0
      %2264 = vadd.xlane.f32.xlu0 %v2263
      %v2265 = vpop.xlane.xlu0 %2264
      %v2266 = vsel %vm2018, %v2201, 0.0
      %2267 = vadd.xlane.f32.xlu0 %v2266
      %v2268 = vpop.xlane.xlu0 %2267
      %v2269 = vsel %vm2018, %v2202, 0.0
      %2270 = vadd.xlane.f32.xlu0 %v2269
      %v2271 = vpop.xlane.xlu0 %2270
      %v2272 = vsel %vm2018, %v2203, 0.0
      %2273 = vadd.xlane.f32.xlu0 %v2272
      %v2274 = vpop.xlane.xlu0 %2273
      %v2275 = vsel %vm2018, %v2204, 0.0
      %2276 = vadd.xlane.f32.xlu0 %v2275
      %v2277 = vpop.xlane.xlu0 %2276
      %v2278 = vsel %vm2018, %v2205, 0.0
      %2279 = vadd.xlane.f32.xlu0 %v2278
      %v2280 = vpop.xlane.xlu0 %2279
      %v2281 = vsel %vm2018, %v2206, 0.0
      %2282 = vadd.xlane.f32.xlu0 %v2281
      %v2283 = vpop.xlane.xlu0 %2282
      %v2284 = vsel %vm2018, %v2207, 0.0
      %2285 = vadd.xlane.f32.xlu0 %v2284
      %v2286 = vpop.xlane.xlu0 %2285
      %v2287 = vsel %vm2018, %v2208, 0.0
      %2288 = vadd.xlane.f32.xlu0 %v2287
      %v2289 = vpop.xlane.xlu0 %2288
      %v2290 = vsel %vm2018, %v2209, 0.0
      %2291 = vadd.xlane.f32.xlu0 %v2290
      %v2292 = vpop.xlane.xlu0 %2291
      %v2293 = vsel %vm2018, %v2210, 0.0
      %2294 = vadd.xlane.f32.xlu0 %v2293
      %v2295 = vpop.xlane.xlu0 %2294
      %v2296 = vsel %vm2018, %v2211, 0.0
      %2297 = vadd.xlane.f32.xlu0 %v2296
      %v2298 = vpop.xlane.xlu0 %2297
      %v2299 = vsel %vm2018, %v2212, 0.0
      %2300 = vadd.xlane.f32.xlu0 %v2299
      %v2301 = vpop.xlane.xlu0 %2300
      %v2302 = vsel %vm2018, %v2213, 0.0
      %2303 = vadd.xlane.f32.xlu0 %v2302
      %v2304 = vpop.xlane.xlu0 %2303
      %v2305 = vsel %vm2018, %v2214, 0.0
      %2306 = vadd.xlane.f32.xlu0 %v2305
      %v2307 = vpop.xlane.xlu0 %2306
      %v2308 = vsel %vm2018, %v2215, 0.0
      %2309 = vadd.xlane.f32.xlu0 %v2308
      %v2310 = vpop.xlane.xlu0 %2309
      %v2311 = vsel %vm2018, %v2216, 0.0
      %2312 = vadd.xlane.f32.xlu0 %v2311
      %v2313 = vpop.xlane.xlu0 %2312
      %v2314 = vsel %vm2018, %v2217, 0.0
      %2315 = vadd.xlane.f32.xlu0 %v2314
      %v2316 = vpop.xlane.xlu0 %2315
      %v2317 = vmul.f32 %v2220, %v2118
      %v2318 = vmul.f32 %v2223, %v2118
      %v2319 = vmul.f32 %v2226, %v2118
      %v2320 = vmul.f32 %v2229, %v2118
      %v2321 = vmul.f32 %v2232, %v2118
      %v2322 = vmul.f32 %v2235, %v2118
      %v2323 = vmul.f32 %v2238, %v2118
      %v2324 = vmul.f32 %v2241, %v2118
      %v2325 = vmul.f32 %v2244, %v2118
      %v2326 = vmul.f32 %v2247, %v2118
      %v2327 = vmul.f32 %v2250, %v2118
      %v2328 = vmul.f32 %v2253, %v2118
      %v2329 = vmul.f32 %v2256, %v2118
      %v2330 = vmul.f32 %v2259, %v2118
      %v2331 = vmul.f32 %v2262, %v2118
      %v2332 = vmul.f32 %v2265, %v2118
      %v2333 = vmul.f32 %v2268, %v2118
      %v2334 = vmul.f32 %v2271, %v2118
      %v2335 = vmul.f32 %v2274, %v2118
      %v2336 = vmul.f32 %v2277, %v2118
      %v2337 = vmul.f32 %v2280, %v2118
      %v2338 = vmul.f32 %v2283, %v2118
      %v2339 = vmul.f32 %v2286, %v2118
      %v2340 = vmul.f32 %v2289, %v2118
      %v2341 = vmul.f32 %v2292, %v2118
      %v2342 = vmul.f32 %v2295, %v2118
      %v2343 = vmul.f32 %v2298, %v2118
      %v2344 = vmul.f32 %v2301, %v2118
      %v2345 = vmul.f32 %v2304, %v2118
      %v2346 = vmul.f32 %v2307, %v2118
      %v2347 = vmul.f32 %v2310, %v2118
      %v2348 = vmul.f32 %v2313, %v2118
      %v2349 = vmul.f32 %v2316, %v2118
      %v2350 = vadd.f32 %v2317, 1e-05
      %v2351 = vadd.f32 %v2318, 1e-05
      %v2352 = vadd.f32 %v2319, 1e-05
      %v2353 = vadd.f32 %v2320, 1e-05
      %v2354 = vadd.f32 %v2321, 1e-05
      %v2355 = vadd.f32 %v2322, 1e-05
      %v2356 = vadd.f32 %v2323, 1e-05
      %v2357 = vadd.f32 %v2324, 1e-05
      %v2358 = vadd.f32 %v2325, 1e-05
      %v2359 = vadd.f32 %v2326, 1e-05
      %v2360 = vadd.f32 %v2327, 1e-05
      %v2361 = vadd.f32 %v2328, 1e-05
      %v2362 = vadd.f32 %v2329, 1e-05
      %v2363 = vadd.f32 %v2330, 1e-05
      %v2364 = vadd.f32 %v2331, 1e-05
      %v2365 = vadd.f32 %v2332, 1e-05
      %v2366 = vadd.f32 %v2333, 1e-05
      %v2367 = vadd.f32 %v2334, 1e-05
      %v2368 = vadd.f32 %v2335, 1e-05
      %v2369 = vadd.f32 %v2336, 1e-05
      %v2370 = vadd.f32 %v2337, 1e-05
      %v2371 = vadd.f32 %v2338, 1e-05
      %v2372 = vadd.f32 %v2339, 1e-05
      %v2373 = vadd.f32 %v2340, 1e-05
      %v2374 = vadd.f32 %v2341, 1e-05
      %v2375 = vadd.f32 %v2342, 1e-05
      %v2376 = vadd.f32 %v2343, 1e-05
      %v2377 = vadd.f32 %v2344, 1e-05
      %v2378 = vadd.f32 %v2345, 1e-05
      %v2379 = vadd.f32 %v2346, 1e-05
      %v2380 = vadd.f32 %v2347, 1e-05
      %v2381 = vadd.f32 %v2348, 1e-05
      %v2382 = vadd.f32 %v2349, 1e-05
      %v2383 = vrsqrt.pop %v2350
      %v2384 = vrsqrt.pop %v2351
      %v2385 = vrsqrt.pop %v2352
      %v2386 = vrsqrt.pop %v2353
      %v2387 = vrsqrt.pop %v2354
      %v2388 = vrsqrt.pop %v2355
      %v2389 = vrsqrt.pop %v2356
      %v2390 = vrsqrt.pop %v2357
      %v2391 = vrsqrt.pop %v2358
      %v2392 = vrsqrt.pop %v2359
      %v2393 = vrsqrt.pop %v2360
      %v2394 = vrsqrt.pop %v2361
      %v2395 = vrsqrt.pop %v2362
      %v2396 = vrsqrt.pop %v2363
      %v2397 = vrsqrt.pop %v2364
      %v2398 = vrsqrt.pop %v2365
      %v2399 = vrsqrt.pop %v2366
      %v2400 = vrsqrt.pop %v2367
      %v2401 = vrsqrt.pop %v2368
      %v2402 = vrsqrt.pop %v2369
      %v2403 = vrsqrt.pop %v2370
      %v2404 = vrsqrt.pop %v2371
      %v2405 = vrsqrt.pop %v2372
      %v2406 = vrsqrt.pop %v2373
      %v2407 = vrsqrt.pop %v2374
      %v2408 = vrsqrt.pop %v2375
      %v2409 = vrsqrt.pop %v2376
      %v2410 = vrsqrt.pop %v2377
      %v2411 = vrsqrt.pop %v2378
      %v2412 = vrsqrt.pop %v2379
      %v2413 = vrsqrt.pop %v2380
      %v2414 = vrsqrt.pop %v2381
      %v2415 = vrsqrt.pop %v2382
      %v2416 = vmul.f32 %v2152, %v2383
      %v2417 = vmul.f32 %v2153, %v2384
      %v2418 = vmul.f32 %v2154, %v2385
      %v2419 = vmul.f32 %v2155, %v2386
      %v2420 = vmul.f32 %v2156, %v2387
      %v2421 = vmul.f32 %v2157, %v2388
      %v2422 = vmul.f32 %v2158, %v2389
      %v2423 = vmul.f32 %v2159, %v2390
      %v2424 = vmul.f32 %v2160, %v2391
      %v2425 = vmul.f32 %v2161, %v2392
      %v2426 = vmul.f32 %v2162, %v2393
      %v2427 = vmul.f32 %v2163, %v2394
      %v2428 = vmul.f32 %v2164, %v2395
      %v2429 = vmul.f32 %v2165, %v2396
      %v2430 = vmul.f32 %v2166, %v2397
      %v2431 = vmul.f32 %v2167, %v2398
      %v2432 = vmul.f32 %v2168, %v2399
      %v2433 = vmul.f32 %v2169, %v2400
      %v2434 = vmul.f32 %v2170, %v2401
      %v2435 = vmul.f32 %v2171, %v2402
      %v2436 = vmul.f32 %v2172, %v2403
      %v2437 = vmul.f32 %v2173, %v2404
      %v2438 = vmul.f32 %v2174, %v2405
      %v2439 = vmul.f32 %v2175, %v2406
      %v2440 = vmul.f32 %v2176, %v2407
      %v2441 = vmul.f32 %v2177, %v2408
      %v2442 = vmul.f32 %v2178, %v2409
      %v2443 = vmul.f32 %v2179, %v2410
      %v2444 = vmul.f32 %v2180, %v2411
      %v2445 = vmul.f32 %v2181, %v2412
      %v2446 = vmul.f32 %v2182, %v2413
      %v2447 = vmul.f32 %v2183, %v2414
      %v2448 = vmul.f32 %v2184, %v2415
      %2449 = vst.msk [vmem:[%s143] sm:$0xff] %vm2018, %v2416
      %2450 = vst.msk [vmem:[%s143 + $0x8] sm:$0xff] %vm2018, %v2417
      %2451 = vst.msk [vmem:[%s143 + $0x10] sm:$0xff] %vm2018, %v2418
      %2452 = vst.msk [vmem:[%s143 + $0x18] sm:$0xff] %vm2018, %v2419
      %2453 = vst.msk [vmem:[%s143 + $0x20] sm:$0xff] %vm2018, %v2420
      %2454 = vst.msk [vmem:[%s143 + $0x28] sm:$0xff] %vm2018, %v2421
      %2455 = vst.msk [vmem:[%s143 + $0x30] sm:$0xff] %vm2018, %v2422
      %2456 = vst.msk [vmem:[%s143 + $0x38] sm:$0xff] %vm2018, %v2423
      %2457 = vst.msk [vmem:[%s143 + $0x40] sm:$0xff] %vm2018, %v2424
      %2458 = vst.msk [vmem:[%s143 + $0x48] sm:$0xff] %vm2018, %v2425
      %2459 = vst.msk [vmem:[%s143 + $0x50] sm:$0xff] %vm2018, %v2426
      %2460 = vst.msk [vmem:[%s143 + $0x58] sm:$0xff] %vm2018, %v2427
      %2461 = vst.msk [vmem:[%s143 + $0x60] sm:$0xff] %vm2018, %v2428
      %2462 = vst.msk [vmem:[%s143 + $0x68] sm:$0xff] %vm2018, %v2429
      %2463 = vst.msk [vmem:[%s143 + $0x70] sm:$0xff] %vm2018, %v2430
      %2464 = vst.msk [vmem:[%s143 + $0x78] sm:$0xff] %vm2018, %v2431
      %2465 = vst.msk [vmem:[%s143 + $0x80] sm:$0xff] %vm2018, %v2432
      %2466 = vst.msk [vmem:[%s143 + $0x88] sm:$0xff] %vm2018, %v2433
      %2467 = vst.msk [vmem:[%s143 + $0x90] sm:$0xff] %vm2018, %v2434
      %2468 = vst.msk [vmem:[%s143 + $0x98] sm:$0xff] %vm2018, %v2435
      %2469 = vst.msk [vmem:[%s143 + $0xa0] sm:$0xff] %vm2018, %v2436
      %2470 = vst.msk [vmem:[%s143 + $0xa8] sm:$0xff] %vm2018, %v2437
      %2471 = vst.msk [vmem:[%s143 + $0xb0] sm:$0xff] %vm2018, %v2438
      %2472 = vst.msk [vmem:[%s143 + $0xb8] sm:$0xff] %vm2018, %v2439
      %2473 = vst.msk [vmem:[%s143 + $0xc0] sm:$0xff] %vm2018, %v2440
      %2474 = vst.msk [vmem:[%s143 + $0xc8] sm:$0xff] %vm2018, %v2441
      %2475 = vst.msk [vmem:[%s143 + $0xd0] sm:$0xff] %vm2018, %v2442
      %2476 = vst.msk [vmem:[%s143 + $0xd8] sm:$0xff] %vm2018, %v2443
      %2477 = vst.msk [vmem:[%s143 + $0xe0] sm:$0xff] %vm2018, %v2444
      %2478 = vst.msk [vmem:[%s143 + $0xe8] sm:$0xff] %vm2018, %v2445
      %2479 = vst.msk [vmem:[%s143 + $0xf0] sm:$0xff] %vm2018, %v2446
      %2480 = vst.msk [vmem:[%s143 + $0xf8] sm:$0xff] %vm2018, %v2447
      %vm2481 = vcmask 81920
      %2482 = vst.msk [vmem:[%s143 + $0x100] sm:$0x1] %vm2481, %v2448
      %p2483 = scmp.lt.s32.totalorder %s13, 1
      %s2484 = scalar_select %p2483, %s13, 1
      %s2485 = smul.addr %s2484, 33
      %s2486 = smul.addr %s2485, 8
      %s2487 = scalar_lea.vmem %s2, %s2486
      // Predicated region
      $region29: #{spectrogram.1} parent=27 // pred_check
        %p2488 = pneg %p78
      $region30: #{spectrogram.1} parent=27 // pred_check_branch
        %2490 = sbr.rel (%p2488) target = $region32
      $region31: #{spectrogram.1} parent=27 // pred_region
        _
      $region32: #{spectrogram.1} parent=27 // pred_fallthru
        _
    $region28: #{spectrogram.1} parent=5 // pred_fallthru
      _
    %p2491 = scmp.le.s32.totalorder 2, %s8
    // Predicated region
    $region33: #{spectrogram.1} parent=5 // pred_check
      %p2492 = pneg %p2491
    $region34: #{spectrogram.1} parent=5 // pred_check_branch
      %2494 = sbr.rel (%p2492) target = $region36
    $region35: #{spectrogram.1} parent=5 // pred_region
      %s2495 = ssub.s32 %s8, 2
      // Predicated region
      $region37: #{spectrogram.1} parent=35 // pred_check
        %p2496 = pneg %p84
      $region38: #{spectrogram.1} parent=35 // pred_check_branch
        %2498 = sbr.rel (%p2496) target = $region40
      $region39: #{spectrogram.1} parent=35 // pred_region
        %p2499 = scmp.lt.s32.totalorder %s14, 1
        %s2500 = scalar_select %p2499, %s14, 1
        %s2501 = smul.addr %s2500, 33
        %s2502 = smul.addr %s2501, 8
        %s2503 = scalar_lea.vmem %s2, %s2502
      $region40: #{spectrogram.1} parent=35 // pred_fallthru
        _
    $region36: #{spectrogram.1} parent=5 // pred_fallthru
      _
  $region6: #{spectrogram.1} parent=0 // loop_footer
    %s12 = sadd.s32 1, %s8
  $region7: #{spectrogram.1} parent=0 // loop_footer_branch
    %7 = sbr.rel target = $region3
  $region8: #{spectrogram.1} parent=0 // loop_exit
    _

</llo_original>
